<compile_context>
chip_gen: v5e
topology: v5e:2x2
jax: 0.10.0
libtpu: 0.0.40
codegen_flags: <defaults>
</compile_context>

<pallas_src>
import functools

import jax
import jax.numpy as jnp
from jax import lax
from jax.experimental import pallas as pl
from jax.experimental.pallas import tpu as pltpu


def _round_up(x, m):
    return (x + m - 1) // m * m


def _pick_tile_h(H):
    # Largest row tile (multiple of 8, <= 32) dividing H; prefer >= 2 tiles so
    # the halo/boundary paths are exercised and the pipeline has depth.
    for th in (32, 24, 16, 8):
        if H % th == 0 and H // th >= 2:
            return th
    for th in (32, 24, 16, 8):
        if H % th == 0:
            return th
    raise ValueError(f"H={H} must be a multiple of 8")


def _vmem_limit_bytes():
    # Per-generation scoped-VMEM limit (review item): ~8 MiB below physical on
    # v7x (64 MiB), capped at ~100 MiB on v5e/v6e (128 MiB physical).
    cap = 64 * 1024 * 1024
    try:
        info = pltpu.get_tpu_info()
        cap = max(cap, int(getattr(info, "vmem_capacity_bytes", cap)))
    except Exception:
        pass
    return int(min(cap - 8 * 1024 * 1024, 100 * 1024 * 1024))


# ---------------------------------------------------------------------------
# Fused kernel: [optional BN(scale,shift)+ReLU of the input] -> 3x3 "same"
# conv -> per-(image, row-tile) partial batch statistics of the conv output.
#
#   x_ref        : (1, TH, Wp, Cin)   this row tile; real data in columns [1, W]
#   xtop/xbot    : (1, 8, Wp, Cin)    8-row neighbour blocks supplying the halo
#   scale/shift  : (1, Cin)           (fused path) previous layer's BN
#   w_ref        : (3, 3, Cin, Cout)  or (9*Cin, Cout) for the im2col path
#   y_ref        : (1, TH, Wp, Cout)  conv output; real data in columns [1, W]
#   psum/psq     : (1, 1, 1, Cout)    partial channel sum / sum of squares
#   xpad_ref     : (TH+2, Wp, Cin)    VMEM scratch, padded tile
#   mat_ref      : (TH*Wp, 9*Cin)     VMEM scratch (im2col path only)
# ---------------------------------------------------------------------------
def _conv3x3_kernel(*refs, W, TH, fuse_input_bn, use_im2col):
    x_ref, xtop_ref, xbot_ref = refs[0], refs[1], refs[2]
    idx = 3
    if fuse_input_bn:
        scale_ref, shift_ref = refs[3], refs[4]
        idx = 5
    else:
        scale_ref = shift_ref = None
    w_ref, y_ref, psum_ref, psq_ref, xpad_ref = refs[idx:idx + 5]
    mat_ref = refs[idx + 5] if use_im2col else None

    t = pl.program_id(1)
    nt = pl.num_programs(1)
    Wp, Cin = xpad_ref.shape[1], xpad_ref.shape[2]
    Cout = y_ref.shape[3]
    total = TH * Wp
    pad_dtype = xpad_ref.dtype

    # {0,1} valid-column mask (tiny (1, Wp, 1) iota; real data in columns [1,W]).
    col = lax.broadcasted_iota(jnp.int32, (1, Wp, 1), 1)
    valid = jnp.logical_and(col >= 1, col <= W)

    def prep(v):
        # v: (rows, Wp, Cin).  Fused path: previous layer's BN + ReLU, then zero
        # the pad columns (they double as this layer's left/right "same" pad).
        if fuse_input_bn:
            v = jnp.maximum(v * scale_ref[...].reshape(1, 1, Cin)
                            + shift_ref[...].reshape(1, 1, Cin), 0.0)
            v = jnp.where(valid, v, 0.0)
        return v.astype(pad_dtype)

    # ---- padded (TH+2, Wp, Cin) tile: interior + two halo rows --------------
    xpad_ref[pl.ds(1, TH)] = prep(x_ref[0])

    @pl.when(t == 0)
    def _():
        xpad_ref[0] = jnp.zeros((Wp, Cin), pad_dtype)

    @pl.when(t > 0)
    def _():
        xpad_ref[0] = prep(xtop_ref[0, 7:8])[0]          # last row of block above

    @pl.when(t == nt - 1)
    def _():
        xpad_ref[TH + 1] = jnp.zeros((Wp, Cin), pad_dtype)

    @pl.when(t < nt - 1)
    def _():
        xpad_ref[TH + 1] = prep(xbot_ref[0, 0:1])[0]     # first row of block below

    # ---- 3x3 conv ------------------------------------------------------------
    # Output column w lives at accumulator column w+1; tap kx reads padded
    # column w+kx, so results are shifted by (1-kx).  Wrap-around only touches
    # pad / discarded columns.
    if use_im2col:
        # Small-Cin path: fold the 9 taps into K -> one (total, 9*Cin) matmul.
        for ky in range(3):
            slab = xpad_ref[ky:ky + TH].reshape(total, Cin)     # f32 scratch
            for kx in range(3):
                shift = (1 - kx) % total
                piece = pltpu.roll(slab, shift=shift, axis=0) if shift else slab
                tap = ky * 3 + kx
                mat_ref[:, tap * Cin:(tap + 1) * Cin] = piece
        acc = jnp.dot(mat_ref[...].astype(w_ref.dtype), w_ref[...],
                      preferred_element_type=jnp.float32)
    else:
        # 9 full-width matmuls; one roll per kx of the summed partial
        # (2 rolls total), dot->accumulate kept adjacent.
        acc = None
        for kx in range(3):
            part = None
            for ky in range(3):
                slab = xpad_ref[ky:ky + TH].reshape(total, Cin)
                d = jnp.dot(slab, w_ref[ky, kx],
                            preferred_element_type=jnp.float32)
                part = d if part is None else part + d
            shift = (1 - kx) % total
            if shift:
                part = pltpu.roll(part, shift=shift, axis=0)
            acc = part if acc is None else acc + part

    # Conv bias omitted: training-mode BatchNorm absorbs it exactly.
    acc3 = acc.reshape(TH, Wp, Cout)
    y_ref[0] = acc3.astype(y_ref.dtype)

    # Partial BN statistics over the valid columns only.
    accv = jnp.where(valid, acc3, 0.0)
    psum_ref[...] = jnp.sum(accv, axis=(0, 1)).reshape(1, 1, 1, Cout)
    psq_ref[...] = jnp.sum(accv * accv, axis=(0, 1)).reshape(1, 1, 1, Cout)


# ---------------------------------------------------------------------------
# Wrapper for one conv layer
# ---------------------------------------------------------------------------
def conv_layer(x, w, *, W, TH, in_scale=None, in_shift=None, use_bf16=False):
    """3x3 'same' conv over a width-padded NHWC tensor, tiled over (image, row tile).

    x : (N, H, Wp, Cin), real data in columns [1, W]; H % TH == 0, TH % 8 == 0.
    Returns (y, psum, psq):
      y    : (N, H, Wp, Cout) conv output (columns [1, W] valid)
      psum : (N, H//TH, 1, Cout) partial channel sums over the valid output
      psq  : (N, H//TH, 1, Cout) matching sums of squares
    If in_scale/in_shift are given, the previous layer's BN+ReLU is applied to
    the input tile (and its halo rows) on the fly before the convolution.
    """
    N, H, Wp, Cin = x.shape
    Cout = w.shape[-1]
    assert w.shape == (3, 3, Cin, Cout)
    assert H % TH == 0 and TH % 8 == 0 and H % 8 == 0
    T = H // TH
    th8 = TH // 8
    nrow8 = H // 8
    fused = in_scale is not None
    mxu_dtype = jnp.bfloat16 if use_bf16 else jnp.float32
    use_im2col = Cin < 8                       # tiny-channel first layer
    pad_dtype = jnp.float32 if use_im2col else mxu_dtype

    if use_im2col:
        w_in = w.reshape(9 * Cin, Cout).astype(mxu_dtype)     # (ky,kx,cin) major
        w_spec = pl.BlockSpec((9 * Cin, Cout), lambda n, t: (0, 0))
    else:
        w_in = w.astype(mxu_dtype)
        w_spec = pl.BlockSpec((3, 3, Cin, Cout), lambda n, t: (0, 0, 0, 0))

    x_spec = pl.BlockSpec((1, TH, Wp, Cin), lambda n, t: (n, t, 0, 0))
    # Neighbouring 8-row blocks of the same array supply the +-1 halo rows;
    # clamped at the image borders (kernel zeroes the halo row there instead).
    xtop_spec = pl.BlockSpec(
        (1, 8, Wp, Cin), lambda n, t: (n, jnp.maximum(t * th8 - 1, 0), 0, 0))
    xbot_spec = pl.BlockSpec(
        (1, 8, Wp, Cin),
        lambda n, t: (n, jnp.minimum((t + 1) * th8, nrow8 - 1), 0, 0))
    c_spec = pl.BlockSpec((1, Cin), lambda n, t: (0, 0))

    inputs = [x, x, x]
    in_specs = [x_spec, xtop_spec, xbot_spec]
    if fused:
        inputs += [in_scale.reshape(1, Cin).astype(jnp.float32),
                   in_shift.reshape(1, Cin).astype(jnp.float32)]
        in_specs += [c_spec, c_spec]
    inputs.append(w_in)
    in_specs.append(w_spec)

    scratch = [pltpu.VMEM((TH + 2, Wp, Cin), pad_dtype)]
    if use_im2col:
        scratch.append(pltpu.VMEM((TH * Wp, 9 * Cin), jnp.float32))

    kernel = functools.partial(
        _conv3x3_kernel, W=W, TH=TH, fuse_input_bn=fused, use_im2col=use_im2col)

    grid_spec = pltpu.PrefetchScalarGridSpec(
        num_scalar_prefetch=0,
        grid=(N, T),
        in_specs=in_specs,
        out_specs=[
            pl.BlockSpec((1, TH, Wp, Cout), lambda n, t: (n, t, 0, 0)),
            pl.BlockSpec((1, 1, 1, Cout), lambda n, t: (n, t, 0, 0)),
            pl.BlockSpec((1, 1, 1, Cout), lambda n, t: (n, t, 0, 0)),
        ],
        scratch_shapes=scratch,
    )
    return pl.pallas_call(
        kernel,
        out_shape=(
            jax.ShapeDtypeStruct((N, H, Wp, Cout), mxu_dtype),
            jax.ShapeDtypeStruct((N, T, 1, Cout), jnp.float32),
            jax.ShapeDtypeStruct((N, T, 1, Cout), jnp.float32),
        ),
        grid_spec=grid_spec,
        compiler_params=pltpu.CompilerParams(
            dimension_semantics=("parallel", "parallel"),
            vmem_limit_bytes=_vmem_limit_bytes(),
        ),
    )(*inputs)


def _bn_scale_shift(psum, psq, gamma, beta, count, eps=1e-5):
    s = jnp.sum(psum, axis=(0, 1, 2))
    q = jnp.sum(psq, axis=(0, 1, 2))
    mean = s / count
    var = jnp.maximum(q / count - mean * mean, 0.0)     # biased batch variance
    scale = gamma * lax.rsqrt(var + eps)
    shift = beta - mean * scale
    return scale, shift


def conv_block_forward(x_nchw, params, *, use_bf16=True):
    """Equivalent of conv_block.forward on an NCHW input (training-mode BN)."""
    N, _, H, W = x_nchw.shape
    assert H >= 8 and H % 8 == 0, "H must be a multiple of 8"
    align = 16 if use_bf16 else 8              # bf16 packs 16 sublanes
    Wp = _round_up(W + 2, align)
    TH = _pick_tile_h(H)
    count = float(N * H * W)
    act_dtype = jnp.bfloat16 if use_bf16 else jnp.float32

    # NCHW -> NHWC, widen to Wp columns (real data in [1, W]) and cast in one
    # XLA copy; the big intermediates are never padded/copied again in HBM.
    x = jnp.transpose(x_nchw, (0, 2, 3, 1)).astype(act_dtype)
    x = jnp.pad(x, ((0, 0), (0, 0), (1, Wp - W - 1), (0, 0)))

    # Layer 1: conv + partial batch stats (its BN1+ReLU is fused into layer 2).
    y1, s1, q1 = conv_layer(x, params["w1"], W=W, TH=TH, use_bf16=use_bf16)
    sc1, sh1 = _bn_scale_shift(s1, q1, params["g1"], params["be1"], count)

    # Layer 2: fused (BN1 + ReLU) -> conv + partial batch stats.
    y2, s2, q2 = conv_layer(y1, params["w2"], W=W, TH=TH,
                            in_scale=sc1, in_shift=sh1, use_bf16=use_bf16)
    sc2, sh2 = _bn_scale_shift(s2, q2, params["g2"], params["be2"], count)

    # Final BN2 + ReLU fused into the trim + NHWC->NCHW copy (review item).
    out = jnp.maximum(y2[:, :, 1:W + 1, :].astype(jnp.float32) * sc2 + sh2, 0.0)
    return jnp.transpose(out, (0, 3, 1, 2))


def init_params(key, ch_in, ch_out):
    k1, k2, k3, k4 = jax.random.split(key, 4)
    # PyTorch weight layout (Cout, Cin, 3, 3) -> kernel layout (3, 3, Cin, Cout).
    w1_t = 0.1 * jax.random.normal(k1, (ch_out, ch_in, 3, 3), jnp.float32)
    w2_t = 0.1 * jax.random.normal(k2, (ch_out, ch_out, 3, 3), jnp.float32)
    return {
        "w1": jnp.transpose(w1_t, (2, 3, 1, 0)),
        # Conv biases are kept for interface fidelity but training-mode BN
        # absorbs them exactly, so the Pallas kernels never read them.
        "b1": 0.1 * jax.random.normal(k3, (ch_out,), jnp.float32),
        "g1": jnp.ones((ch_out,), jnp.float32),
        "be1": jnp.zeros((ch_out,), jnp.float32),
        "w2": jnp.transpose(w2_t, (2, 3, 1, 0)),
        "b2": 0.1 * jax.random.normal(k4, (ch_out,), jnp.float32),
        "g2": jnp.ones((ch_out,), jnp.float32),
        "be2": jnp.zeros((ch_out,), jnp.float32),
    }


def _reference_forward(x_nchw, params, eps=1e-5):
    """Pure-XLA reference (lax.conv with bias + training-mode BN + ReLU)."""
    def layer(x, w, b, g, be):
        y = lax.conv_general_dilated(
            x, w, window_strides=(1, 1), padding="SAME",
            dimension_numbers=("NHWC", "HWIO", "NHWC"),
            precision=lax.Precision.HIGHEST) + b
        mean = jnp.mean(y, axis=(0, 1, 2))
        var = jnp.mean(jnp.square(y - mean), axis=(0, 1, 2))
        return jnp.maximum((y - mean) * g / jnp.sqrt(var + eps) + be, 0.0)

    x = jnp.transpose(x_nchw, (0, 2, 3, 1))
    x = layer(x, params["w1"], params["b1"], params["g1"], params["be1"])
    x = layer(x, params["w2"], params["b2"], params["g2"], params["be2"])
    return jnp.transpose(x, (0, 3, 1, 2))


if __name__ == "__main__":
    key = jax.random.PRNGKey(0)
    kx_, kp_ = jax.random.split(key)

    N, CH_IN, CH_OUT, H, W = 2, 4, 8, 16, 16
    x = jax.random.normal(kx_, (N, CH_IN, H, W), jnp.float32)  # NCHW like PyTorch
    params = init_params(kp_, CH_IN, CH_OUT)

    # ---- strict structural check, f32 kernel path ---------------------------
    # Pre-rounding inputs/weights to bf16-representable f32 makes the kernel-vs-
    # reference comparison insensitive to how many MXU passes the f32 dot uses,
    # so a tight tolerance is safe and still catches halo / roll / mask / stats
    # off-by-one bugs (those produce O(1) errors).
    rd = lambda a: a.astype(jnp.bfloat16).astype(jnp.float32)
    xq = rd(x)
    pq = {k: rd(v) for k, v in params.items()}
    out_f32 = jax.block_until_ready(conv_block_forward(xq, pq, use_bf16=False))
    assert out_f32.shape == (N, CH_OUT, H, W)
    ref_f32 = _reference_forward(xq, pq)
    err_f32 = float(jnp.max(jnp.abs(out_f32 - ref_f32)))
    assert err_f32 < 1e-4, f"f32 path: max abs err {err_f32}"

    # ---- bf16 fast path (bf16 activations/weights, f32 accumulation) --------
    out_bf = jax.block_until_ready(conv_block_forward(x, params, use_bf16=True))
    ref = _reference_forward(x, params)
    err_bf = float(jnp.max(jnp.abs(out_bf - ref)))
    assert err_bf < 1e-1, f"bf16 path: max abs err {err_bf}"

    print("KERNEL_OK")
</pallas_src>

<mosaic_0001>
module attributes {stable_mosaic.version = 11 : i64} {
  func.func @_conv3x3_kernel(%arg0: i32, %arg1: i32, %arg2: memref<1x8x24x4xf32, #tpu.memory_space<vmem>>, %arg3: memref<1x8x24x4xf32, #tpu.memory_space<vmem>>, %arg4: memref<1x8x24x4xf32, #tpu.memory_space<vmem>>, %arg5: memref<36x8xf32, #tpu.memory_space<vmem>>, %arg6: memref<1x8x24x8xf32, #tpu.memory_space<vmem>>, %arg7: memref<1x1x1x8xf32, #tpu.memory_space<vmem>>, %arg8: memref<1x1x1x8xf32, #tpu.memory_space<vmem>>, %arg9: memref<10x24x4xf32, #tpu.memory_space<vmem>>, %arg10: memref<192x36xf32, #tpu.memory_space<vmem>>) attributes {dimension_semantics = [#tpu.dimension_semantics<parallel>, #tpu.dimension_semantics<parallel>], iteration_bounds = array<i64: 2, 2>, scalar_prefetch = 0 : i64, scratch_operands = 2 : i64, tpu.core_type = #tpu.core_type<tc>, window_params = [{transform_indices = @transform_0, window_bounds = array<i64: 1, 8, 24, 4>}, {transform_indices = @transform_1, window_bounds = array<i64: 1, 8, 24, 4>}, {transform_indices = @transform_2, window_bounds = array<i64: 1, 8, 24, 4>}, {pipeline_mode = #tpu.pipeline_mode<synchronous>, transform_indices = @transform_3, window_bounds = array<i64: 36, 8>}, {transform_indices = @transform_4, window_bounds = array<i64: 1, 8, 24, 8>}, {transform_indices = @transform_5, window_bounds = array<i64: 1, 1, 1, 8>}, {transform_indices = @transform_6, window_bounds = array<i64: 1, 1, 1, 8>}]} {
    %0 = tpu.iota {dimensions = array<i32: 1>} : vector<1x24x1xi32>
    %c1_i32 = arith.constant 1 : i32
    %1 = vector.broadcast %c1_i32 : i32 to vector<1x24x1xi32>
    %2 = arith.cmpi sge, %0, %1 : vector<1x24x1xi32>
    %c16_i32 = arith.constant 16 : i32
    %3 = vector.broadcast %c16_i32 : i32 to vector<1x24x1xi32>
    %4 = arith.cmpi sle, %0, %3 : vector<1x24x1xi32>
    %5 = arith.andi %2, %4 : vector<1x24x1xi1>
    %c0 = arith.constant 0 : index
    %c0_0 = arith.constant 0 : index
    %c0_1 = arith.constant 0 : index
    %c0_2 = arith.constant 0 : index
    %6 = vector.load %arg2[%c0, %c0_0, %c0_1, %c0_2] : memref<1x8x24x4xf32, #tpu.memory_space<vmem>>, vector<1x8x24x4xf32>
    %7 = vector.shape_cast %6 : vector<1x8x24x4xf32> to vector<8x24x4xf32>
    %c1 = arith.constant 1 : index
    %c0_3 = arith.constant 0 : index
    %c0_4 = arith.constant 0 : index
    %8 = vector.load %arg9[%c1, %c0_3, %c0_4] : memref<10x24x4xf32, #tpu.memory_space<vmem>>, vector<8x24x4xf32>
    tpu.vector_store %arg9[%c1, %c0_3, %c0_4], %7 {strides = array<i32>} : memref<10x24x4xf32, #tpu.memory_space<vmem>>, vector<8x24x4xf32>,
    %c0_i32 = arith.constant 0 : i32
    %9 = arith.cmpi eq, %arg1, %c0_i32 : i32
    %10 = arith.extui %9 : i1 to i32
    %c0_i32_5 = arith.constant 0 : i32
    %11 = arith.cmpi ne, %10, %c0_i32_5 : i32
    scf.if %11 {
      %cst_54 = arith.constant 0.000000e+00 : f32
      %60 = vector.broadcast %cst_54 : f32 to vector<24x4xf32>
      %c0_55 = arith.constant 0 : index
      %c0_56 = arith.constant 0 : index
      %c0_57 = arith.constant 0 : index
      %61 = vector.load %arg9[%c0_55, %c0_56, %c0_57] : memref<10x24x4xf32, #tpu.memory_space<vmem>>, vector<1x24x4xf32>
      %62 = vector.shape_cast %61 : vector<1x24x4xf32> to vector<24x4xf32>
      %63 = vector.shape_cast %60 : vector<24x4xf32> to vector<1x24x4xf32>
      tpu.vector_store %arg9[%c0_55, %c0_56, %c0_57], %63 {strides = array<i32>} : memref<10x24x4xf32, #tpu.memory_space<vmem>>, vector<1x24x4xf32>,
    } else {
    }
    %c0_i32_6 = arith.constant 0 : i32
    %12 = arith.cmpi sgt, %arg1, %c0_i32_6 : i32
    %13 = arith.extui %12 : i1 to i32
    %c0_i32_7 = arith.constant 0 : i32
    %14 = arith.cmpi ne, %13, %c0_i32_7 : i32
    scf.if %14 {
      %c0_54 = arith.constant 0 : index
      %c7 = arith.constant 7 : index
      %c0_55 = arith.constant 0 : index
      %c0_56 = arith.constant 0 : index
      %60 = vector.load %arg3[%c0_54, %c7, %c0_55, %c0_56] : memref<1x8x24x4xf32, #tpu.memory_space<vmem>>, vector<1x1x24x4xf32>
      %61 = vector.shape_cast %60 : vector<1x1x24x4xf32> to vector<1x24x4xf32>
      %62 = vector.shape_cast %61 : vector<1x24x4xf32> to vector<24x4xf32>
      %c0_57 = arith.constant 0 : index
      %c0_58 = arith.constant 0 : index
      %c0_59 = arith.constant 0 : index
      %63 = vector.load %arg9[%c0_57, %c0_58, %c0_59] : memref<10x24x4xf32, #tpu.memory_space<vmem>>, vector<1x24x4xf32>
      %64 = vector.shape_cast %63 : vector<1x24x4xf32> to vector<24x4xf32>
      %65 = vector.shape_cast %62 : vector<24x4xf32> to vector<1x24x4xf32>
      tpu.vector_store %arg9[%c0_57, %c0_58, %c0_59], %65 {strides = array<i32>} : memref<10x24x4xf32, #tpu.memory_space<vmem>>, vector<1x24x4xf32>,
    } else {
    }
    %c1_i32_8 = arith.constant 1 : i32
    %15 = arith.cmpi eq, %arg1, %c1_i32_8 : i32
    %16 = arith.extui %15 : i1 to i32
    %c0_i32_9 = arith.constant 0 : i32
    %17 = arith.cmpi ne, %16, %c0_i32_9 : i32
    scf.if %17 {
      %cst_54 = arith.constant 0.000000e+00 : f32
      %60 = vector.broadcast %cst_54 : f32 to vector<24x4xf32>
      %c9 = arith.constant 9 : index
      %c0_55 = arith.constant 0 : index
      %c0_56 = arith.constant 0 : index
      %61 = vector.load %arg9[%c9, %c0_55, %c0_56] : memref<10x24x4xf32, #tpu.memory_space<vmem>>, vector<1x24x4xf32>
      %62 = vector.shape_cast %61 : vector<1x24x4xf32> to vector<24x4xf32>
      %63 = vector.shape_cast %60 : vector<24x4xf32> to vector<1x24x4xf32>
      tpu.vector_store %arg9[%c9, %c0_55, %c0_56], %63 {strides = array<i32>} : memref<10x24x4xf32, #tpu.memory_space<vmem>>, vector<1x24x4xf32>,
    } else {
    }
    %c1_i32_10 = arith.constant 1 : i32
    %18 = arith.cmpi slt, %arg1, %c1_i32_10 : i32
    %19 = arith.extui %18 : i1 to i32
    %c0_i32_11 = arith.constant 0 : i32
    %20 = arith.cmpi ne, %19, %c0_i32_11 : i32
    scf.if %20 {
      %c0_54 = arith.constant 0 : index
      %c0_55 = arith.constant 0 : index
      %c0_56 = arith.constant 0 : index
      %c0_57 = arith.constant 0 : index
      %60 = vector.load %arg4[%c0_54, %c0_55, %c0_56, %c0_57] : memref<1x8x24x4xf32, #tpu.memory_space<vmem>>, vector<1x1x24x4xf32>
      %61 = vector.shape_cast %60 : vector<1x1x24x4xf32> to vector<1x24x4xf32>
      %62 = vector.shape_cast %61 : vector<1x24x4xf32> to vector<24x4xf32>
      %c9 = arith.constant 9 : index
      %c0_58 = arith.constant 0 : index
      %c0_59 = arith.constant 0 : index
      %63 = vector.load %arg9[%c9, %c0_58, %c0_59] : memref<10x24x4xf32, #tpu.memory_space<vmem>>, vector<1x24x4xf32>
      %64 = vector.shape_cast %63 : vector<1x24x4xf32> to vector<24x4xf32>
      %65 = vector.shape_cast %62 : vector<24x4xf32> to vector<1x24x4xf32>
      tpu.vector_store %arg9[%c9, %c0_58, %c0_59], %65 {strides = array<i32>} : memref<10x24x4xf32, #tpu.memory_space<vmem>>, vector<1x24x4xf32>,
    } else {
    }
    %c0_12 = arith.constant 0 : index
    %c0_13 = arith.constant 0 : index
    %c0_14 = arith.constant 0 : index
    %21 = vector.load %arg9[%c0_12, %c0_13, %c0_14] : memref<10x24x4xf32, #tpu.memory_space<vmem>>, vector<8x24x4xf32>
    %22 = vector.shape_cast %21 : vector<8x24x4xf32> to vector<192x4xf32>
    %c1_i32_15 = arith.constant 1 : i32
    %23 = tpu.dynamic_rotate %22 by %c1_i32_15 dim 0 : vector<192x4xf32>, i32 -> vector<192x4xf32>
    %c0_16 = arith.constant 0 : index
    %c0_17 = arith.constant 0 : index
    %24 = vector.load %arg10[%c0_16, %c0_17] : memref<192x36xf32, #tpu.memory_space<vmem>>, vector<192x4xf32>
    tpu.vector_store %arg10[%c0_16, %c0_17], %23 {strides = array<i32>} : memref<192x36xf32, #tpu.memory_space<vmem>>, vector<192x4xf32>,
    %c0_18 = arith.constant 0 : index
    %c4 = arith.constant 4 : index
    %25 = vector.load %arg10[%c0_18, %c4] : memref<192x36xf32, #tpu.memory_space<vmem>>, vector<192x4xf32>
    tpu.vector_store %arg10[%c0_18, %c4], %22 {strides = array<i32>} : memref<192x36xf32, #tpu.memory_space<vmem>>, vector<192x4xf32>,
    %c191_i32 = arith.constant 191 : i32
    %26 = tpu.dynamic_rotate %22 by %c191_i32 dim 0 : vector<192x4xf32>, i32 -> vector<192x4xf32>
    %c0_19 = arith.constant 0 : index
    %c8 = arith.constant 8 : index
    %27 = vector.load %arg10[%c0_19, %c8] : memref<192x36xf32, #tpu.memory_space<vmem>>, vector<192x4xf32>
    tpu.vector_store %arg10[%c0_19, %c8], %26 {strides = array<i32>} : memref<192x36xf32, #tpu.memory_space<vmem>>, vector<192x4xf32>,
    %c1_20 = arith.constant 1 : index
    %c0_21 = arith.constant 0 : index
    %c0_22 = arith.constant 0 : index
    %28 = vector.load %arg9[%c1_20, %c0_21, %c0_22] : memref<10x24x4xf32, #tpu.memory_space<vmem>>, vector<8x24x4xf32>
    %29 = vector.shape_cast %28 : vector<8x24x4xf32> to vector<192x4xf32>
    %c1_i32_23 = arith.constant 1 : i32
    %30 = tpu.dynamic_rotate %29 by %c1_i32_23 dim 0 : vector<192x4xf32>, i32 -> vector<192x4xf32>
    %c0_24 = arith.constant 0 : index
    %c12 = arith.constant 12 : index
    %31 = vector.load %arg10[%c0_24, %c12] : memref<192x36xf32, #tpu.memory_space<vmem>>, vector<192x4xf32>
    tpu.vector_store %arg10[%c0_24, %c12], %30 {strides = array<i32>} : memref<192x36xf32, #tpu.memory_space<vmem>>, vector<192x4xf32>,
    %c0_25 = arith.constant 0 : index
    %c16 = arith.constant 16 : index
    %32 = vector.load %arg10[%c0_25, %c16] : memref<192x36xf32, #tpu.memory_space<vmem>>, vector<192x4xf32>
    tpu.vector_store %arg10[%c0_25, %c16], %29 {strides = array<i32>} : memref<192x36xf32, #tpu.memory_space<vmem>>, vector<192x4xf32>,
    %c191_i32_26 = arith.constant 191 : i32
    %33 = tpu.dynamic_rotate %29 by %c191_i32_26 dim 0 : vector<192x4xf32>, i32 -> vector<192x4xf32>
    %c0_27 = arith.constant 0 : index
    %c20 = arith.constant 20 : index
    %34 = vector.load %arg10[%c0_27, %c20] : memref<192x36xf32, #tpu.memory_space<vmem>>, vector<192x4xf32>
    tpu.vector_store %arg10[%c0_27, %c20], %33 {strides = array<i32>} : memref<192x36xf32, #tpu.memory_space<vmem>>, vector<192x4xf32>,
    %c2 = arith.constant 2 : index
    %c0_28 = arith.constant 0 : index
    %c0_29 = arith.constant 0 : index
    %35 = vector.load %arg9[%c2, %c0_28, %c0_29] : memref<10x24x4xf32, #tpu.memory_space<vmem>>, vector<8x24x4xf32>
    %36 = vector.shape_cast %35 : vector<8x24x4xf32> to vector<192x4xf32>
    %c1_i32_30 = arith.constant 1 : i32
    %37 = tpu.dynamic_rotate %36 by %c1_i32_30 dim 0 : vector<192x4xf32>, i32 -> vector<192x4xf32>
    %c0_31 = arith.constant 0 : index
    %c24 = arith.constant 24 : index
    %38 = vector.load %arg10[%c0_31, %c24] : memref<192x36xf32, #tpu.memory_space<vmem>>, vector<192x4xf32>
    tpu.vector_store %arg10[%c0_31, %c24], %37 {strides = array<i32>} : memref<192x36xf32, #tpu.memory_space<vmem>>, vector<192x4xf32>,
    %c0_32 = arith.constant 0 : index
    %c28 = arith.constant 28 : index
    %39 = vector.load %arg10[%c0_32, %c28] : memref<192x36xf32, #tpu.memory_space<vmem>>, vector<192x4xf32>
    tpu.vector_store %arg10[%c0_32, %c28], %36 {strides = array<i32>} : memref<192x36xf32, #tpu.memory_space<vmem>>, vector<192x4xf32>,
    %c191_i32_33 = arith.constant 191 : i32
    %40 = tpu.dynamic_rotate %36 by %c191_i32_33 dim 0 : vector<192x4xf32>, i32 -> vector<192x4xf32>
    %c0_34 = arith.constant 0 : index
    %c32 = arith.constant 32 : index
    %41 = vector.load %arg10[%c0_34, %c32] : memref<192x36xf32, #tpu.memory_space<vmem>>, vector<192x4xf32>
    tpu.vector_store %arg10[%c0_34, %c32], %40 {strides = array<i32>} : memref<192x36xf32, #tpu.memory_space<vmem>>, vector<192x4xf32>,
    %c0_35 = arith.constant 0 : index
    %c0_36 = arith.constant 0 : index
    %42 = vector.load %arg10[%c0_35, %c0_36] : memref<192x36xf32, #tpu.memory_space<vmem>>, vector<192x36xf32>
    %c0_37 = arith.constant 0 : index
    %c0_38 = arith.constant 0 : index
    %43 = vector.load %arg5[%c0_37, %c0_38] : memref<36x8xf32, #tpu.memory_space<vmem>>, vector<36x8xf32>
    %cst = arith.constant dense<0.000000e+00> : vector<192x8xf32>
    %44 = tpu.matmul %42, %43, %cst {dimension_numbers = #tpu.dot_dimension_numbers<[1], [0], [0], [1], [0, 0, 1, 1], [], []>} : vector<192x36xf32>, vector<36x8xf32>, vector<192x8xf32> -> vector<192x8xf32>
    %45 = vector.shape_cast %44 : vector<192x8xf32> to vector<8x24x8xf32>
    %c0_39 = arith.constant 0 : index
    %c0_40 = arith.constant 0 : index
    %c0_41 = arith.constant 0 : index
    %c0_42 = arith.constant 0 : index
    %46 = vector.load %arg6[%c0_39, %c0_40, %c0_41, %c0_42] : memref<1x8x24x8xf32, #tpu.memory_space<vmem>>, vector<1x8x24x8xf32>
    %47 = vector.shape_cast %46 : vector<1x8x24x8xf32> to vector<8x24x8xf32>
    %48 = vector.shape_cast %45 : vector<8x24x8xf32> to vector<1x8x24x8xf32>
    tpu.vector_store %arg6[%c0_39, %c0_40, %c0_41, %c0_42], %48 {strides = array<i32>} : memref<1x8x24x8xf32, #tpu.memory_space<vmem>>, vector<1x8x24x8xf32>,
    %cst_43 = arith.constant 0.000000e+00 : f32
    %49 = vector.shape_cast %5 : vector<1x24x1xi1> to vector<1x24x1xi1>
    %50 = vector.broadcast %49 : vector<1x24x1xi1> to vector<8x24x8xi1>
    %51 = vector.broadcast %cst_43 : f32 to vector<8x24x8xf32>
    %52 = arith.select %50, %45, %51 : vector<8x24x8xi1>, vector<8x24x8xf32>
    %cst_44 = arith.constant dense<0.000000e+00> : vector<8xf32>
    %53 = vector.multi_reduction <add>, %52, %cst_44 [0, 1] : vector<8x24x8xf32> to vector<8xf32>
    %54 = vector.shape_cast %53 : vector<8xf32> to vector<1x1x1x8xf32>
    %c0_45 = arith.constant 0 : index
    %c0_46 = arith.constant 0 : index
    %c0_47 = arith.constant 0 : index
    %c0_48 = arith.constant 0 : index
    %55 = vector.load %arg7[%c0_45, %c0_46, %c0_47, %c0_48] : memref<1x1x1x8xf32, #tpu.memory_space<vmem>>, vector<1x1x1x8xf32>
    tpu.vector_store %arg7[%c0_45, %c0_46, %c0_47, %c0_48], %54 {strides = array<i32>} : memref<1x1x1x8xf32, #tpu.memory_space<vmem>>, vector<1x1x1x8xf32>,
    %56 = arith.mulf %52, %52 : vector<8x24x8xf32>
    %cst_49 = arith.constant dense<0.000000e+00> : vector<8xf32>
    %57 = vector.multi_reduction <add>, %56, %cst_49 [0, 1] : vector<8x24x8xf32> to vector<8xf32>
    %58 = vector.shape_cast %57 : vector<8xf32> to vector<1x1x1x8xf32>
    %c0_50 = arith.constant 0 : index
    %c0_51 = arith.constant 0 : index
    %c0_52 = arith.constant 0 : index
    %c0_53 = arith.constant 0 : index
    %59 = vector.load %arg8[%c0_50, %c0_51, %c0_52, %c0_53] : memref<1x1x1x8xf32, #tpu.memory_space<vmem>>, vector<1x1x1x8xf32>
    tpu.vector_store %arg8[%c0_50, %c0_51, %c0_52, %c0_53], %58 {strides = array<i32>} : memref<1x1x1x8xf32, #tpu.memory_space<vmem>>, vector<1x1x1x8xf32>,
    return
  }
  func.func @transform_0(%arg0: i32, %arg1: i32) -> (i32, i32, i32, i32) {
    %c0_i32 = arith.constant 0 : i32
    %c0_i32_0 = arith.constant 0 : i32
    %c0_i32_1 = arith.constant 0 : i32
    return %arg0, %arg1, %c0_i32, %c0_i32_0 : i32, i32, i32, i32
  }
  func.func @transform_1(%arg0: i32, %arg1: i32) -> (i32, i32, i32, i32) {
    %c1_i32 = arith.constant 1 : i32
    %0 = arith.muli %arg1, %c1_i32 : i32
    %c1_i32_0 = arith.constant 1 : i32
    %1 = arith.subi %0, %c1_i32_0 : i32
    %c0_i32 = arith.constant 0 : i32
    %2 = arith.maxsi %1, %c0_i32 : i32
    %c0_i32_1 = arith.constant 0 : i32
    %c0_i32_2 = arith.constant 0 : i32
    %c0_i32_3 = arith.constant 0 : i32
    return %arg0, %2, %c0_i32_1, %c0_i32_2 : i32, i32, i32, i32
  }
  func.func @transform_2(%arg0: i32, %arg1: i32) -> (i32, i32, i32, i32) {
    %c1_i32 = arith.constant 1 : i32
    %0 = arith.addi %arg1, %c1_i32 : i32
    %c1_i32_0 = arith.constant 1 : i32
    %1 = arith.muli %0, %c1_i32_0 : i32
    %c1_i32_1 = arith.constant 1 : i32
    %2 = arith.minsi %1, %c1_i32_1 : i32
    %c0_i32 = arith.constant 0 : i32
    %c0_i32_2 = arith.constant 0 : i32
    %c0_i32_3 = arith.constant 0 : i32
    return %arg0, %2, %c0_i32, %c0_i32_2 : i32, i32, i32, i32
  }
  func.func @transform_3(%arg0: i32, %arg1: i32) -> (i32, i32) {
    %c0_i32 = arith.constant 0 : i32
    %c0_i32_0 = arith.constant 0 : i32
    %c0_i32_1 = arith.constant 0 : i32
    return %c0_i32, %c0_i32_0 : i32, i32
  }
  func.func @transform_4(%arg0: i32, %arg1: i32) -> (i32, i32, i32, i32) {
    %c0_i32 = arith.constant 0 : i32
    %c0_i32_0 = arith.constant 0 : i32
    %c0_i32_1 = arith.constant 0 : i32
    return %arg0, %arg1, %c0_i32, %c0_i32_0 : i32, i32, i32, i32
  }
  func.func @transform_5(%arg0: i32, %arg1: i32) -> (i32, i32, i32, i32) {
    %c0_i32 = arith.constant 0 : i32
    %c0_i32_0 = arith.constant 0 : i32
    %c0_i32_1 = arith.constant 0 : i32
    return %arg0, %arg1, %c0_i32, %c0_i32_0 : i32, i32, i32, i32
  }
  func.func @transform_6(%arg0: i32, %arg1: i32) -> (i32, i32, i32, i32) {
    %c0_i32 = arith.constant 0 : i32
    %c0_i32_0 = arith.constant 0 : i32
    %c0_i32_1 = arith.constant 0 : i32
    return %arg0, %arg1, %c0_i32, %c0_i32_0 : i32, i32, i32, i32
  }
}

</mosaic_0001>

<llo_original>
// kernel: tpu_custom_call.1
$region0: #{tpu_custom_call.1}
  #allocation0 [shape = 'u32[]', space=smem, size = 0x4, offset = 0x4, fixed_abs, tag = 'smem constant byte address 0x4 - core index']
  #allocation1 [shape = 'u32[72,128]{1,0:T(1,128)}', space=vmem, size = 0x9000, scoped, tag = 'internal scratch']
  #allocation2 [shape = 'f32[10,24,4]{2,1,0:T(8,128)}', space=vmem, size = 0x1e000, scoped, tag = 'scratch operand']
  #allocation3 [shape = 'f32[192,36]{1,0:T(8,128)}', space=vmem, size = 0x18000, scoped, tag = 'scratch operand']
  %s0 = inlined_call_operand.vmem [shape: f32[2,16,24,4], index: 0, kind: input, shape index: {}]
  %s1 = inlined_call_operand.vmem [shape: f32[2,16,24,4], index: 1, kind: input, shape index: {}]
  %s2 = inlined_call_operand.vmem [shape: f32[2,16,24,4], index: 2, kind: input, shape index: {}]
  %s3 = inlined_call_operand.vmem [shape: f32[36,8], index: 3, kind: input, shape index: {}]
  %s4 = inlined_call_operand.vmem [shape: f32[2,16,24,8], index: 4, kind: output, shape index: {0}]
  %s5 = inlined_call_operand.hbm [shape: f32[2,2,1,8], index: 5, kind: output, shape index: {1}]
  %s6 = inlined_call_operand.hbm [shape: f32[2,2,1,8], index: 6, kind: output, shape index: {2}]
  %7 = xla_tuple %s4, %s5, %s6
  %s8 = sld [smem:[#allocation0]]
  $region81: #{tpu_custom_call.1} parent=0
    _
  %s10 = ssub.s32 1, %s8
  %s11 = scalar_select 0, %s10, %s8
  $region1: #{tpu_custom_call.1} parent=0
    #allocation4 [shape = 'u8[1024]{0}', space=vmem, size = 0x400, scoped, tag = 'output window, operand 1']
    #allocation5 [shape = 's32[2]{0}', space=sflag, size = 0x8, scoped, tag = 'scoped memory for tpu_custom_call.1']
    #allocation6 [shape = 'u8[1024]{0}', space=vmem, size = 0x400, scoped, tag = 'output window, operand 2']
    #allocation7 [shape = 's32[2]{0}', space=sflag, size = 0x8, scoped, tag = 'scoped memory for tpu_custom_call.1']
    %12 = vsyncpa [#allocation5], 0
    %s13 = scalar_lea.sflag [#allocation5], 1
    %14 = vsyncpa %s13, 0
    %15 = vsyncpa [#allocation7], 0
    %s16 = scalar_lea.sflag [#allocation7], 1
    %17 = vsyncpa %s16, 0
    loop: start=0, step=1, limit=6
    $region2: #{tpu_custom_call.1} parent=1 // loop_pre_header
      _
    $region3: #{tpu_custom_call.1} parent=1 // loop_header
      %s19 = sphi 0, %s23
      %p20 = scmp.ge.s32.totalorder %s19, 6
      %s26 = sphi 0, %s38
      %s27 = sphi 0, %s34
      %s28 = sphi 0, %s26
      %s29 = sphi 0, %s27
      %s30 = sphi 0, %s28
      %s31 = sphi 0, %s29
      %s43 = sphi 0, %s45
      %s46 = sphi 0, %s43
      %s47 = sphi 0, %s46
      %s63 = sphi 0, %s47
      %s77 = sphi 0, %s79
      %s80 = sphi 0, %s77
      %s81 = sphi 0, %s80
      %s97 = sphi 0, %s81
      %s111 = sphi 0, %s113
      %s114 = sphi 0, %s111
      %s115 = sphi 0, %s114
      %s131 = sphi 0, %s115
      %s135 = sphi 0, %s135
      %s137 = sphi 0, %s135
      %s138 = sphi 0, %s137
      %s152 = sphi 0, %s138
      %s160 = sphi 0, %s162
      %s163 = sphi 0, %s160
      %s164 = sphi 0, %s163
      %s180 = sphi 0, %s164
      %s188 = sphi 0, %s190
      %s191 = sphi 0, %s188
      %s192 = sphi 0, %s191
      %s208 = sphi 0, %s192
      %s216 = sphi 0, %s218
      %s219 = sphi 0, %s216
      %s220 = sphi 0, %s219
      %s236 = sphi 0, %s220
    $region4: #{tpu_custom_call.1} parent=1 // loop_header_branch
      %22 = sbr.rel (%p20) target = $region8
    $region5: #{tpu_custom_call.1} parent=1 // loop_body
      %s24 = ssub.s32 %s19, 1
      %s25 = ssub.s32 %s19, 2
      %s32 = sadd.s32 1, %s27
      %p33 = scmp.ge.s32.totalorder %s32, 2
      %s34 = scalar_select %p33, 0, %s32
      %s35 = sadd.s32 1, %s26
      %s36 = scalar_select %p33, %s35, %s26
      %p37 = scmp.ge.s32.totalorder %s36, 2
      %s38 = scalar_select %p37, 0, %s36
      %s39 = ssub.s32 %s26, %s38
      %s40 = ssub.s32 %s27, %s34
      %s41 = sor.u32 %s39, %s40
      %p42 = scmp.eq.s32.totalorder %s41, 0
      %s44 = sadd.s32 %s43, 1
      %s45 = scalar_select %p42, %s43, %s44
      %p48 = pneg %p42
      %p49 = scmp.eq.s32.totalorder %s19, 3
      %p50 = por %p48, %p49
      %p51 = scmp.ne.s32.totalorder %s43, %s46
      %p52 = scmp.eq.s32.totalorder %s19, 0
      %p53 = por %p51, %p52
      %p54 = scmp.ne.s32.totalorder %s43, %s46
      %p55 = scmp.eq.s32.totalorder %s24, 3
      %p56 = por %p54, %p55
      %p57 = scmp.ne.s32.totalorder %s46, %s47
      %p58 = scmp.eq.s32.totalorder %s24, 0
      %p59 = por %p57, %p58
      %p60 = scmp.ne.s32.totalorder %s46, %s47
      %p61 = scmp.eq.s32.totalorder %s25, 3
      %p62 = por %p60, %p61
      %p64 = scmp.ne.s32.totalorder %s47, %s63
      %p65 = scmp.eq.s32.totalorder %s25, 0
      %p66 = por %p64, %p65
      %s67 = ssub.s32 %s27, 1
      %p68 = scmp.gt.s32.totalorder %s67, 0
      %s69 = scalar_select %p68, %s67, 0
      %s70 = ssub.s32 %s34, 1
      %p71 = scmp.gt.s32.totalorder %s70, 0
      %s72 = scalar_select %p71, %s70, 0
      %s73 = ssub.s32 %s26, %s38
      %s74 = ssub.s32 %s69, %s72
      %s75 = sor.u32 %s73, %s74
      %p76 = scmp.eq.s32.totalorder %s75, 0
      %s78 = sadd.s32 %s77, 1
      %s79 = scalar_select %p76, %s77, %s78
      %p82 = pneg %p76
      %p83 = scmp.eq.s32.totalorder %s19, 3
      %p84 = por %p82, %p83
      %p85 = scmp.ne.s32.totalorder %s77, %s80
      %p86 = scmp.eq.s32.totalorder %s19, 0
      %p87 = por %p85, %p86
      %p88 = scmp.ne.s32.totalorder %s77, %s80
      %p89 = scmp.eq.s32.totalorder %s24, 3
      %p90 = por %p88, %p89
      %p91 = scmp.ne.s32.totalorder %s80, %s81
      %p92 = scmp.eq.s32.totalorder %s24, 0
      %p93 = por %p91, %p92
      %p94 = scmp.ne.s32.totalorder %s80, %s81
      %p95 = scmp.eq.s32.totalorder %s25, 3
      %p96 = por %p94, %p95
      %p98 = scmp.ne.s32.totalorder %s81, %s97
      %p99 = scmp.eq.s32.totalorder %s25, 0
      %p100 = por %p98, %p99
      %s101 = sadd.s32 %s27, 1
      %p102 = scmp.lt.s32.totalorder %s101, 1
      %s103 = scalar_select %p102, %s101, 1
      %s104 = sadd.s32 %s34, 1
      %p105 = scmp.lt.s32.totalorder %s104, 1
      %s106 = scalar_select %p105, %s104, 1
      %s107 = ssub.s32 %s26, %s38
      %s108 = ssub.s32 %s103, %s106
      %s109 = sor.u32 %s107, %s108
      %p110 = scmp.eq.s32.totalorder %s109, 0
      %s112 = sadd.s32 %s111, 1
      %s113 = scalar_select %p110, %s111, %s112
      %p116 = pneg %p110
      %p117 = scmp.eq.s32.totalorder %s19, 3
      %p118 = por %p116, %p117
      %p119 = scmp.ne.s32.totalorder %s111, %s114
      %p120 = scmp.eq.s32.totalorder %s19, 0
      %p121 = por %p119, %p120
      %p122 = scmp.ne.s32.totalorder %s111, %s114
      %p123 = scmp.eq.s32.totalorder %s24, 3
      %p124 = por %p122, %p123
      %p125 = scmp.ne.s32.totalorder %s114, %s115
      %p126 = scmp.eq.s32.totalorder %s24, 0
      %p127 = por %p125, %p126
      %p128 = scmp.ne.s32.totalorder %s114, %s115
      %p129 = scmp.eq.s32.totalorder %s25, 3
      %p130 = por %p128, %p129
      %p132 = scmp.ne.s32.totalorder %s115, %s131
      %p133 = scmp.eq.s32.totalorder %s25, 0
      %p134 = por %p132, %p133
      %s136 = sadd.s32 %s135, 1
      %p139 = scmp.eq.s32.totalorder %s19, 3
      %p140 = scmp.ne.s32.totalorder %s135, %s137
      %p141 = scmp.eq.s32.totalorder %s19, 0
      %p142 = por %p140, %p141
      %p143 = scmp.ne.s32.totalorder %s135, %s137
      %p144 = scmp.eq.s32.totalorder %s24, 3
      %p145 = por %p143, %p144
      %p146 = scmp.ne.s32.totalorder %s137, %s138
      %p147 = scmp.eq.s32.totalorder %s24, 0
      %p148 = por %p146, %p147
      %p149 = scmp.ne.s32.totalorder %s137, %s138
      %p150 = scmp.eq.s32.totalorder %s25, 3
      %p151 = por %p149, %p150
      %p153 = scmp.ne.s32.totalorder %s138, %s152
      %p154 = scmp.eq.s32.totalorder %s25, 0
      %p155 = por %p153, %p154
      %s156 = ssub.s32 %s26, %s38
      %s157 = ssub.s32 %s27, %s34
      %s158 = sor.u32 %s156, %s157
      %p159 = scmp.eq.s32.totalorder %s158, 0
      %s161 = sadd.s32 %s160, 1
      %s162 = scalar_select %p159, %s160, %s161
      %p165 = pneg %p159
      %p166 = scmp.eq.s32.totalorder %s19, 3
      %p167 = por %p165, %p166
      %p168 = scmp.ne.s32.totalorder %s160, %s163
      %p169 = scmp.eq.s32.totalorder %s19, 0
      %p170 = por %p168, %p169
      %p171 = scmp.ne.s32.totalorder %s160, %s163
      %p172 = scmp.eq.s32.totalorder %s24, 3
      %p173 = por %p171, %p172
      %p174 = scmp.ne.s32.totalorder %s163, %s164
      %p175 = scmp.eq.s32.totalorder %s24, 0
      %p176 = por %p174, %p175
      %p177 = scmp.ne.s32.totalorder %s163, %s164
      %p178 = scmp.eq.s32.totalorder %s25, 3
      %p179 = por %p177, %p178
      %p181 = scmp.ne.s32.totalorder %s164, %s180
      %p182 = scmp.eq.s32.totalorder %s25, 0
      %p183 = por %p181, %p182
      %s184 = ssub.s32 %s26, %s38
      %s185 = ssub.s32 %s27, %s34
      %s186 = sor.u32 %s184, %s185
      %p187 = scmp.eq.s32.totalorder %s186, 0
      %s189 = sadd.s32 %s188, 1
      %s190 = scalar_select %p187, %s188, %s189
      %p193 = pneg %p187
      %p194 = scmp.eq.s32.totalorder %s19, 3
      %p195 = por %p193, %p194
      %p196 = scmp.ne.s32.totalorder %s188, %s191
      %p197 = scmp.eq.s32.totalorder %s19, 0
      %p198 = por %p196, %p197
      %p199 = scmp.ne.s32.totalorder %s188, %s191
      %p200 = scmp.eq.s32.totalorder %s24, 3
      %p201 = por %p199, %p200
      %p202 = scmp.ne.s32.totalorder %s191, %s192
      %p203 = scmp.eq.s32.totalorder %s24, 0
      %p204 = por %p202, %p203
      %p205 = scmp.ne.s32.totalorder %s191, %s192
      %p206 = scmp.eq.s32.totalorder %s25, 3
      %p207 = por %p205, %p206
      %p209 = scmp.ne.s32.totalorder %s192, %s208
      %p210 = scmp.eq.s32.totalorder %s25, 0
      %p211 = por %p209, %p210
      %s212 = ssub.s32 %s26, %s38
      %s213 = ssub.s32 %s27, %s34
      %s214 = sor.u32 %s212, %s213
      %p215 = scmp.eq.s32.totalorder %s214, 0
      %s217 = sadd.s32 %s216, 1
      %s218 = scalar_select %p215, %s216, %s217
      %p221 = pneg %p215
      %p222 = scmp.eq.s32.totalorder %s19, 3
      %p223 = por %p221, %p222
      %p224 = scmp.ne.s32.totalorder %s216, %s219
      %p225 = scmp.eq.s32.totalorder %s19, 0
      %p226 = por %p224, %p225
      %p227 = scmp.ne.s32.totalorder %s216, %s219
      %p228 = scmp.eq.s32.totalorder %s24, 3
      %p229 = por %p227, %p228
      %p230 = scmp.ne.s32.totalorder %s219, %s220
      %p231 = scmp.eq.s32.totalorder %s24, 0
      %p232 = por %p230, %p231
      %p233 = scmp.ne.s32.totalorder %s219, %s220
      %p234 = scmp.eq.s32.totalorder %s25, 3
      %p235 = por %p233, %p234
      %p237 = scmp.ne.s32.totalorder %s220, %s236
      %p238 = scmp.eq.s32.totalorder %s25, 0
      %p239 = por %p237, %p238
      %p240 = scmp.le.s32.totalorder 1, %s19
      %p241 = scmp.lt.s32.totalorder %s19, 5
      %p242 = pnand %p240, %p241
      %p243 = pneg %p242
      // Predicated region
      $region9: #{tpu_custom_call.1} parent=5 // pred_check
        _
      $region10: #{tpu_custom_call.1} parent=5 // pred_check_branch
        %245 = sbr.rel (%p242) target = $region12
      $region11: #{tpu_custom_call.1} parent=5 // pred_region
        %s246 = ssub.s32 %s19, 1
        // Predicated region
        $region13: #{tpu_custom_call.1} parent=11 // pred_check
          %p247 = pneg %p148
        $region14: #{tpu_custom_call.1} parent=11 // pred_check_branch
          %249 = sbr.rel (%p247) target = $region16
        $region15: #{tpu_custom_call.1} parent=11 // pred_region
          _
        $region16: #{tpu_custom_call.1} parent=11 // pred_fallthru
          _
      $region12: #{tpu_custom_call.1} parent=5 // pred_fallthru
        _
      %p250 = scmp.lt.s32.totalorder %s19, 4
      // Predicated region
      $region17: #{tpu_custom_call.1} parent=5 // pred_check
        %p251 = pneg %p250
      $region18: #{tpu_custom_call.1} parent=5 // pred_check_branch
        %253 = sbr.rel (%p251) target = $region20
      $region19: #{tpu_custom_call.1} parent=5 // pred_region
        // Predicated region
        $region21: #{tpu_custom_call.1} parent=19 // pred_check
          %p254 = pneg %p53
        $region22: #{tpu_custom_call.1} parent=19 // pred_check_branch
          %256 = sbr.rel (%p254) target = $region24
        $region23: #{tpu_custom_call.1} parent=19 // pred_region
          %s257 = smul.u32 8, %s27
          %p258 = scmp.lt.s32.totalorder %s26, 1
          %s259 = scalar_select %p258, %s26, 1
          %p260 = scmp.lt.s32.totalorder %s257, 15
          %s261 = scalar_select %p260, %s257, 15
          %s262 = smul.addr %s261, 3
          %s263 = smul.addr %s259, 48
          %s264 = sadd.s32 %s262, %s263
          %s265 = smul.addr %s264, 8
          %s266 = scalar_lea.vmem %s0, %s265
          %s267 = smul.u32 8, %s27
        $region24: #{tpu_custom_call.1} parent=19 // pred_fallthru
          _
        // Predicated region
        $region25: #{tpu_custom_call.1} parent=19 // pred_check
          %p268 = pneg %p87
        $region26: #{tpu_custom_call.1} parent=19 // pred_check_branch
          %270 = sbr.rel (%p268) target = $region28
        $region27: #{tpu_custom_call.1} parent=19 // pred_region
          %s271 = ssub.s32 %s27, 1
          %p272 = scmp.gt.s32.totalorder %s271, 0
          %s273 = scalar_select %p272, %s271, 0
          %s274 = smul.u32 8, %s273
          %p275 = scmp.lt.s32.totalorder %s26, 1
          %s276 = scalar_select %p275, %s26, 1
          %p277 = scmp.lt.s32.totalorder %s274, 15
          %s278 = scalar_select %p277, %s274, 15
          %s279 = smul.addr %s278, 3
          %s280 = smul.addr %s276, 48
          %s281 = sadd.s32 %s279, %s280
          %s282 = smul.addr %s281, 8
          %s283 = scalar_lea.vmem %s1, %s282
          %s284 = ssub.s32 %s27, 1
          %p285 = scmp.gt.s32.totalorder %s284, 0
          %s286 = scalar_select %p285, %s284, 0
          %s287 = smul.u32 8, %s286
        $region28: #{tpu_custom_call.1} parent=19 // pred_fallthru
          _
        // Predicated region
        $region29: #{tpu_custom_call.1} parent=19 // pred_check
          %p288 = pneg %p121
        $region30: #{tpu_custom_call.1} parent=19 // pred_check_branch
          %290 = sbr.rel (%p288) target = $region32
        $region31: #{tpu_custom_call.1} parent=19 // pred_region
          %s291 = sadd.s32 %s27, 1
          %p292 = scmp.lt.s32.totalorder %s291, 1
          %s293 = scalar_select %p292, %s291, 1
          %s294 = smul.u32 8, %s293
          %p295 = scmp.lt.s32.totalorder %s26, 1
          %s296 = scalar_select %p295, %s26, 1
          %p297 = scmp.lt.s32.totalorder %s294, 15
          %s298 = scalar_select %p297, %s294, 15
          %s299 = smul.addr %s298, 3
          %s300 = smul.addr %s296, 48
          %s301 = sadd.s32 %s299, %s300
          %s302 = smul.addr %s301, 8
          %s303 = scalar_lea.vmem %s2, %s302
          %s304 = sadd.s32 %s27, 1
          %p305 = scmp.lt.s32.totalorder %s304, 1
          %s306 = scalar_select %p305, %s304, 1
          %s307 = smul.u32 8, %s306
        $region32: #{tpu_custom_call.1} parent=19 // pred_fallthru
          _
      $region20: #{tpu_custom_call.1} parent=5 // pred_fallthru
        _
      %p308 = scmp.le.s32.totalorder 1, %s19
      %p309 = scmp.lt.s32.totalorder %s19, 5
      %p310 = pnand %p308, %p309
      %p311 = pneg %p310
      // Predicated region
      $region33: #{tpu_custom_call.1} parent=5 // pred_check
        _
      $region34: #{tpu_custom_call.1} parent=5 // pred_check_branch
        %313 = sbr.rel (%p310) target = $region36
      $region35: #{tpu_custom_call.1} parent=5 // pred_region
        %s314 = ssub.s32 %s19, 1
        %s315 = smul.u32 8, %s29
        %p316 = scmp.lt.s32.totalorder %s28, 1
        %s317 = scalar_select %p316, %s28, 1
        %p318 = scmp.lt.s32.totalorder %s315, 15
        %s319 = scalar_select %p318, %s315, 15
        %s320 = smul.addr %s319, 3
        %s321 = smul.addr %s317, 48
        %s322 = sadd.s32 %s320, %s321
        %s323 = smul.addr %s322, 8
        %s324 = scalar_lea.vmem %s0, %s323
        %p325 = pneg %p59
        %p326 = pneg %p56
        %s327 = ssub.s32 %s29, 1
        %p328 = scmp.gt.s32.totalorder %s327, 0
        %s329 = scalar_select %p328, %s327, 0
        %s330 = smul.u32 8, %s329
        %p331 = scmp.lt.s32.totalorder %s28, 1
        %s332 = scalar_select %p331, %s28, 1
        %p333 = scmp.lt.s32.totalorder %s330, 15
        %s334 = scalar_select %p333, %s330, 15
        %s335 = smul.addr %s334, 3
        %s336 = smul.addr %s332, 48
        %s337 = sadd.s32 %s335, %s336
        %s338 = smul.addr %s337, 8
        %s339 = scalar_lea.vmem %s1, %s338
        %p340 = pneg %p93
        %p341 = pneg %p90
        %s342 = sadd.s32 %s29, 1
        %p343 = scmp.lt.s32.totalorder %s342, 1
        %s344 = scalar_select %p343, %s342, 1
        %s345 = smul.u32 8, %s344
        %p346 = scmp.lt.s32.totalorder %s28, 1
        %s347 = scalar_select %p346, %s28, 1
        %p348 = scmp.lt.s32.totalorder %s345, 15
        %s349 = scalar_select %p348, %s345, 15
        %s350 = smul.addr %s349, 3
        %s351 = smul.addr %s347, 48
        %s352 = sadd.s32 %s350, %s351
        %s353 = smul.addr %s352, 8
        %s354 = scalar_lea.vmem %s2, %s353
        %p355 = pneg %p127
        %p356 = pneg %p124
        %p357 = pneg %p148
        %p358 = pneg %p145
        %p359 = pneg %p176
        %p360 = pneg %p173
        %s361 = smul.u32 8, %s29
        %p362 = scmp.lt.s32.totalorder %s28, 1
        %s363 = scalar_select %p362, %s28, 1
        %p364 = scmp.lt.s32.totalorder %s361, 15
        %s365 = scalar_select %p364, %s361, 15
        %s366 = smul.addr %s365, 3
        %s367 = smul.addr %s363, 48
        %s368 = sadd.s32 %s366, %s367
        %s369 = smul.addr %s368, 8
        %s370 = scalar_lea.vmem %s4, %s369
        %p371 = pneg %p204
        %p372 = pneg %p201
        %s373 = sand.u32 %s191, 1
        %s374 = scalar_lea.sflag [#allocation5], %s373
        %s375 = sand.u32 %s191, 1
        %s376 = scalar_lea.vmem [#allocation4], %s375
        %p377 = pneg %p232
        %p378 = pneg %p229
        %s379 = sand.u32 %s219, 1
        %s380 = scalar_lea.sflag [#allocation7], %s379
        %s381 = sand.u32 %s219, 1
        %s382 = scalar_lea.vmem [#allocation6], %s381
        %s383 = smul.u32 8, %s29
        %p384 = scmp.lt.s32.totalorder %s28, 1
        %s385 = scalar_select %p384, %s28, 1
        %p386 = scmp.lt.s32.totalorder %s383, 15
        %s387 = scalar_select %p386, %s383, 15
        %s388 = smul.addr %s387, 3
        %s389 = smul.addr %s385, 48
        %s390 = sadd.s32 %s388, %s389
        %s391 = smul.addr %s390, 8
        %s392 = scalar_lea.vmem %s0, %s391
        %s393 = smul.u32 8, %s29
        %s394 = ssub.s32 %s29, 1
        %p395 = scmp.gt.s32.totalorder %s394, 0
        %s396 = scalar_select %p395, %s394, 0
        %s397 = smul.u32 8, %s396
        %p398 = scmp.lt.s32.totalorder %s28, 1
        %s399 = scalar_select %p398, %s28, 1
        %p400 = scmp.lt.s32.totalorder %s397, 15
        %s401 = scalar_select %p400, %s397, 15
        %s402 = smul.addr %s401, 3
        %s403 = smul.addr %s399, 48
        %s404 = sadd.s32 %s402, %s403
        %s405 = smul.addr %s404, 8
        %s406 = scalar_lea.vmem %s1, %s405
        %s407 = ssub.s32 %s29, 1
        %p408 = scmp.gt.s32.totalorder %s407, 0
        %s409 = scalar_select %p408, %s407, 0
        %s410 = smul.u32 8, %s409
        %s411 = sadd.s32 %s29, 1
        %p412 = scmp.lt.s32.totalorder %s411, 1
        %s413 = scalar_select %p412, %s411, 1
        %s414 = smul.u32 8, %s413
        %p415 = scmp.lt.s32.totalorder %s28, 1
        %s416 = scalar_select %p415, %s28, 1
        %p417 = scmp.lt.s32.totalorder %s414, 15
        %s418 = scalar_select %p417, %s414, 15
        %s419 = smul.addr %s418, 3
        %s420 = smul.addr %s416, 48
        %s421 = sadd.s32 %s419, %s420
        %s422 = smul.addr %s421, 8
        %s423 = scalar_lea.vmem %s2, %s422
        %s424 = sadd.s32 %s29, 1
        %p425 = scmp.lt.s32.totalorder %s424, 1
        %s426 = scalar_select %p425, %s424, 1
        %s427 = smul.u32 8, %s426
        %s428 = smul.u32 8, %s29
        %p429 = scmp.lt.s32.totalorder %s28, 1
        %s430 = scalar_select %p429, %s28, 1
        %p431 = scmp.lt.s32.totalorder %s428, 15
        %s432 = scalar_select %p431, %s428, 15
        %s433 = smul.addr %s432, 3
        %s434 = smul.addr %s430, 48
        %s435 = sadd.s32 %s433, %s434
        %s436 = smul.addr %s435, 8
        %s437 = scalar_lea.vmem %s4, %s436
        %s438 = smul.u32 8, %s29
        %v439 = vlaneseq
        %v440 = vshrl.u32 %v439, 7
        %v441 = vadd.s32 %v440, 8
        %v442 = vadd.s32 %v440, 16
        %vm443 = vcmp.ge.s32.totalorder %v440, 1
        %vm444 = vcmp.ge.s32.totalorder %v441, 1
        %vm445 = vcmp.ge.s32.totalorder %v442, 1
        %vm446 = vcmp.le.s32.totalorder %v440, 16
        %vm447 = vcmp.le.s32.totalorder %v441, 16
        %vm448 = vcmp.le.s32.totalorder %v442, 16
        %vm449 = vmand %vm443, %vm446
        %vm450 = vmand %vm444, %vm447
        %vm451 = vmand %vm445, %vm448
        %v452 = vld [vmem:[%s392] sm:$0xff]
        %v453 = vld [vmem:[%s392 + $0x8] sm:$0xff]
        %v454 = vld [vmem:[%s392 + $0x10] sm:$0xff]
        %v455 = vld [vmem:[%s392 + $0x18] sm:$0xff]
        %v456 = vld [vmem:[%s392 + $0x20] sm:$0xff]
        %v457 = vld [vmem:[%s392 + $0x28] sm:$0xff]
        %v458 = vld [vmem:[%s392 + $0x30] sm:$0xff]
        %v459 = vld [vmem:[%s392 + $0x38] sm:$0xff]
        %v460 = vld [vmem:[%s392 + $0x40] sm:$0xff]
        %v461 = vld [vmem:[%s392 + $0x48] sm:$0xff]
        %v462 = vld [vmem:[%s392 + $0x50] sm:$0xff]
        %v463 = vld [vmem:[%s392 + $0x58] sm:$0xff]
        %v464 = vld [vmem:[%s392 + $0x60] sm:$0xff]
        %v465 = vld [vmem:[%s392 + $0x68] sm:$0xff]
        %v466 = vld [vmem:[%s392 + $0x70] sm:$0xff]
        %v467 = vld [vmem:[%s392 + $0x78] sm:$0xff]
        %v468 = vld [vmem:[%s392 + $0x80] sm:$0xff]
        %v469 = vld [vmem:[%s392 + $0x88] sm:$0xff]
        %v470 = vld [vmem:[%s392 + $0x90] sm:$0xff]
        %v471 = vld [vmem:[%s392 + $0x98] sm:$0xff]
        %v472 = vld [vmem:[%s392 + $0xa0] sm:$0xff]
        %v473 = vld [vmem:[%s392 + $0xa8] sm:$0xff]
        %v474 = vld [vmem:[%s392 + $0xb0] sm:$0xff]
        %v475 = vld [vmem:[%s392 + $0xb8] sm:$0xff]
        %s476 = scalar_lea.vmem [#allocation2], 24
        %vm477 = vcmask 31744
        %478 = vst.msk [vmem:[%s476] sm:$0xff] %vm477, %v452
        %479 = vst.msk [vmem:[%s476 + $0x8] sm:$0xff] %vm477, %v453
        %480 = vst.msk [vmem:[%s476 + $0x10] sm:$0xff] %vm477, %v454
        %481 = vst.msk [vmem:[%s476 + $0x18] sm:$0xff] %vm477, %v455
        %482 = vst.msk [vmem:[%s476 + $0x20] sm:$0xff] %vm477, %v456
        %483 = vst.msk [vmem:[%s476 + $0x28] sm:$0xff] %vm477, %v457
        %484 = vst.msk [vmem:[%s476 + $0x30] sm:$0xff] %vm477, %v458
        %485 = vst.msk [vmem:[%s476 + $0x38] sm:$0xff] %vm477, %v459
        %486 = vst.msk [vmem:[%s476 + $0x40] sm:$0xff] %vm477, %v460
        %487 = vst.msk [vmem:[%s476 + $0x48] sm:$0xff] %vm477, %v461
        %488 = vst.msk [vmem:[%s476 + $0x50] sm:$0xff] %vm477, %v462
        %489 = vst.msk [vmem:[%s476 + $0x58] sm:$0xff] %vm477, %v463
        %490 = vst.msk [vmem:[%s476 + $0x60] sm:$0xff] %vm477, %v464
        %491 = vst.msk [vmem:[%s476 + $0x68] sm:$0xff] %vm477, %v465
        %492 = vst.msk [vmem:[%s476 + $0x70] sm:$0xff] %vm477, %v466
        %493 = vst.msk [vmem:[%s476 + $0x78] sm:$0xff] %vm477, %v467
        %494 = vst.msk [vmem:[%s476 + $0x80] sm:$0xff] %vm477, %v468
        %495 = vst.msk [vmem:[%s476 + $0x88] sm:$0xff] %vm477, %v469
        %496 = vst.msk [vmem:[%s476 + $0x90] sm:$0xff] %vm477, %v470
        %497 = vst.msk [vmem:[%s476 + $0x98] sm:$0xff] %vm477, %v471
        %498 = vst.msk [vmem:[%s476 + $0xa0] sm:$0xff] %vm477, %v472
        %499 = vst.msk [vmem:[%s476 + $0xa8] sm:$0xff] %vm477, %v473
        %500 = vst.msk [vmem:[%s476 + $0xb0] sm:$0xff] %vm477, %v474
        %501 = vst.msk [vmem:[%s476 + $0xb8] sm:$0xff] %vm477, %v475
        %p502 = scmp.eq.s32.totalorder %s29, 0
        // Predicated region
        $region37: #{tpu_custom_call.1} parent=35 // pred_check
          %p503 = pneg %p502
        $region38: #{tpu_custom_call.1} parent=35 // pred_check_branch
          %505 = sbr.rel (%p503) target = $region40
        $region39: #{tpu_custom_call.1} parent=35 // pred_region
          %506 = vst.msk [vmem:[#allocation2] sm:$0xff] %vm477, 0.0
          %507 = vst.msk [vmem:[#allocation2 + $0x8] sm:$0xff] %vm477, 0.0
          %508 = vst.msk [vmem:[#allocation2 + $0x10] sm:$0xff] %vm477, 0.0
        $region40: #{tpu_custom_call.1} parent=35 // pred_fallthru
          _
        %p509 = scmp.gt.s32.totalorder %s29, 0
        // Predicated region
        $region41: #{tpu_custom_call.1} parent=35 // pred_check
          %p510 = pneg %p509
        $region42: #{tpu_custom_call.1} parent=35 // pred_check_branch
          %512 = sbr.rel (%p510) target = $region44
        $region43: #{tpu_custom_call.1} parent=35 // pred_region
          %s513 = scalar_lea.vmem %s406, 168
          %v514 = vld [vmem:[%s513] sm:$0xff]
          %v515 = vld [vmem:[%s513 + $0x8] sm:$0xff]
          %v516 = vld [vmem:[%s513 + $0x10] sm:$0xff]
          %517 = vst.msk [vmem:[#allocation2] sm:$0xff] %vm477, %v514
          %518 = vst.msk [vmem:[#allocation2 + $0x8] sm:$0xff] %vm477, %v515
          %519 = vst.msk [vmem:[#allocation2 + $0x10] sm:$0xff] %vm477, %v516
        $region44: #{tpu_custom_call.1} parent=35 // pred_fallthru
          _
        %p520 = scmp.eq.s32.totalorder %s29, 1
        // Predicated region
        $region45: #{tpu_custom_call.1} parent=35 // pred_check
          %p521 = pneg %p520
        $region46: #{tpu_custom_call.1} parent=35 // pred_check_branch
          %523 = sbr.rel (%p521) target = $region48
        $region47: #{tpu_custom_call.1} parent=35 // pred_region
          %s524 = scalar_lea.vmem [#allocation2], 216
          %525 = vst.msk [vmem:[%s524] sm:$0xff] %vm477, 0.0
          %526 = vst.msk [vmem:[%s524 + $0x8] sm:$0xff] %vm477, 0.0
          %527 = vst.msk [vmem:[%s524 + $0x10] sm:$0xff] %vm477, 0.0
        $region48: #{tpu_custom_call.1} parent=35 // pred_fallthru
          _
        %p528 = scmp.lt.s32.totalorder %s29, 1
        // Predicated region
        $region49: #{tpu_custom_call.1} parent=35 // pred_check
          %p529 = pneg %p528
        $region50: #{tpu_custom_call.1} parent=35 // pred_check_branch
          %531 = sbr.rel (%p529) target = $region52
        $region51: #{tpu_custom_call.1} parent=35 // pred_region
          %v532 = vld [vmem:[%s423] sm:$0xff]
          %v533 = vld [vmem:[%s423 + $0x8] sm:$0xff]
          %v534 = vld [vmem:[%s423 + $0x10] sm:$0xff]
          %s535 = scalar_lea.vmem [#allocation2], 216
          %536 = vst.msk [vmem:[%s535] sm:$0xff] %vm477, %v532
          %537 = vst.msk [vmem:[%s535 + $0x8] sm:$0xff] %vm477, %v533
          %538 = vst.msk [vmem:[%s535 + $0x10] sm:$0xff] %vm477, %v534
        $region52: #{tpu_custom_call.1} parent=35 // pred_fallthru
          _
        %v539 = vld [vmem:[#allocation2] sm:$0xff]
        %v540 = vld [vmem:[#allocation2 + $0x8] sm:$0xff]
        %v541 = vld [vmem:[#allocation2 + $0x10] sm:$0xff]
        %v542 = vld [vmem:[#allocation2 + $0x18] sm:$0xff]
        %v543 = vld [vmem:[#allocation2 + $0x20] sm:$0xff]
        %v544 = vld [vmem:[#allocation2 + $0x28] sm:$0xff]
        %v545 = vld [vmem:[#allocation2 + $0x30] sm:$0xff]
        %v546 = vld [vmem:[#allocation2 + $0x38] sm:$0xff]
        %v547 = vld [vmem:[#allocation2 + $0x40] sm:$0xff]
        %v548 = vld [vmem:[#allocation2 + $0x48] sm:$0xff]
        %v549 = vld [vmem:[#allocation2 + $0x50] sm:$0xff]
        %v550 = vld [vmem:[#allocation2 + $0x58] sm:$0xff]
        %v551 = vld [vmem:[#allocation2 + $0x60] sm:$0xff]
        %v552 = vld [vmem:[#allocation2 + $0x68] sm:$0xff]
        %v553 = vld [vmem:[#allocation2 + $0x70] sm:$0xff]
        %v554 = vld [vmem:[#allocation2 + $0x78] sm:$0xff]
        %v555 = vld [vmem:[#allocation2 + $0x80] sm:$0xff]
        %v556 = vld [vmem:[#allocation2 + $0x88] sm:$0xff]
        %v557 = vld [vmem:[#allocation2 + $0x90] sm:$0xff]
        %v558 = vld [vmem:[#allocation2 + $0x98] sm:$0xff]
        %v559 = vld [vmem:[#allocation2 + $0xa0] sm:$0xff]
        %v560 = vld [vmem:[#allocation2 + $0xa8] sm:$0xff]
        %v561 = vld [vmem:[#allocation2 + $0xb0] sm:$0xff]
        %v562 = vld [vmem:[#allocation2 + $0xb8] sm:$0xff]
        %v563 = vrot.slane %v539, 7
        %v564 = vrot.slane %v540, 7
        %v565 = vrot.slane %v541, 7
        %v566 = vrot.slane %v542, 7
        %v567 = vrot.slane %v543, 7
        %v568 = vrot.slane %v544, 7
        %v569 = vrot.slane %v545, 7
        %v570 = vrot.slane %v546, 7
        %v571 = vrot.slane %v547, 7
        %v572 = vrot.slane %v548, 7
        %v573 = vrot.slane %v549, 7
        %v574 = vrot.slane %v550, 7
        %v575 = vrot.slane %v551, 7
        %v576 = vrot.slane %v552, 7
        %v577 = vrot.slane %v553, 7
        %v578 = vrot.slane %v554, 7
        %v579 = vrot.slane %v555, 7
        %v580 = vrot.slane %v556, 7
        %v581 = vrot.slane %v557, 7
        %v582 = vrot.slane %v558, 7
        %v583 = vrot.slane %v559, 7
        %v584 = vrot.slane %v560, 7
        %v585 = vrot.slane %v561, 7
        %v586 = vrot.slane %v562, 7
        %vm587 = vcmp.lt.s32.totalorder %v440, 1
        %v588 = vsel %vm587, %v585, %v586
        %v589 = vsel %vm587, %v584, %v585
        %v590 = vsel %vm587, %v583, %v584
        %v591 = vsel %vm587, %v582, %v583
        %v592 = vsel %vm587, %v581, %v582
        %v593 = vsel %vm587, %v580, %v581
        %v594 = vsel %vm587, %v579, %v580
        %v595 = vsel %vm587, %v578, %v579
        %v596 = vsel %vm587, %v577, %v578
        %v597 = vsel %vm587, %v576, %v577
        %v598 = vsel %vm587, %v575, %v576
        %v599 = vsel %vm587, %v574, %v575
        %v600 = vsel %vm587, %v573, %v574
        %v601 = vsel %vm587, %v572, %v573
        %v602 = vsel %vm587, %v571, %v572
        %v603 = vsel %vm587, %v570, %v571
        %v604 = vsel %vm587, %v569, %v570
        %v605 = vsel %vm587, %v568, %v569
        %v606 = vsel %vm587, %v567, %v568
        %v607 = vsel %vm587, %v566, %v567
        %v608 = vsel %vm587, %v565, %v566
        %v609 = vsel %vm587, %v564, %v565
        %v610 = vsel %vm587, %v563, %v564
        %v611 = vsel %vm587, %v586, %v563
        %612 = vst.msk [vmem:[#allocation3] sm:$0xff] %vm477, %v611
        %613 = vst.msk [vmem:[#allocation3 + $0x8] sm:$0xff] %vm477, %v610
        %614 = vst.msk [vmem:[#allocation3 + $0x10] sm:$0xff] %vm477, %v609
        %615 = vst.msk [vmem:[#allocation3 + $0x18] sm:$0xff] %vm477, %v608
        %616 = vst.msk [vmem:[#allocation3 + $0x20] sm:$0xff] %vm477, %v607
        %617 = vst.msk [vmem:[#allocation3 + $0x28] sm:$0xff] %vm477, %v606
        %618 = vst.msk [vmem:[#allocation3 + $0x30] sm:$0xff] %vm477, %v605
        %619 = vst.msk [vmem:[#allocation3 + $0x38] sm:$0xff] %vm477, %v604
        %620 = vst.msk [vmem:[#allocation3 + $0x40] sm:$0xff] %vm477, %v603
        %621 = vst.msk [vmem:[#allocation3 + $0x48] sm:$0xff] %vm477, %v602
        %622 = vst.msk [vmem:[#allocation3 + $0x50] sm:$0xff] %vm477, %v601
        %623 = vst.msk [vmem:[#allocation3 + $0x58] sm:$0xff] %vm477, %v600
        %624 = vst.msk [vmem:[#allocation3 + $0x60] sm:$0xff] %vm477, %v599
        %625 = vst.msk [vmem:[#allocation3 + $0x68] sm:$0xff] %vm477, %v598
        %626 = vst.msk [vmem:[#allocation3 + $0x70] sm:$0xff] %vm477, %v597
        %627 = vst.msk [vmem:[#allocation3 + $0x78] sm:$0xff] %vm477, %v596
        %628 = vst.msk [vmem:[#allocation3 + $0x80] sm:$0xff] %vm477, %v595
        %629 = vst.msk [vmem:[#allocation3 + $0x88] sm:$0xff] %vm477, %v594
        %630 = vst.msk [vmem:[#allocation3 + $0x90] sm:$0xff] %vm477, %v593
        %631 = vst.msk [vmem:[#allocation3 + $0x98] sm:$0xff] %vm477, %v592
        %632 = vst.msk [vmem:[#allocation3 + $0xa0] sm:$0xff] %vm477, %v591
        %633 = vst.msk [vmem:[#allocation3 + $0xa8] sm:$0xff] %vm477, %v590
        %634 = vst.msk [vmem:[#allocation3 + $0xb0] sm:$0xff] %vm477, %v589
        %635 = vst.msk [vmem:[#allocation3 + $0xb8] sm:$0xff] %vm477, %v588
        %660 = vrot.lane.b32.xlu0 %v539, 4
        %v661 = vpop.permute.xlu0 %660
        %662 = vrot.lane.b32.xlu0 %v540, 4
        %v663 = vpop.permute.xlu0 %662
        %664 = vrot.lane.b32.xlu0 %v541, 4
        %v665 = vpop.permute.xlu0 %664
        %666 = vrot.lane.b32.xlu0 %v542, 4
        %v667 = vpop.permute.xlu0 %666
        %668 = vrot.lane.b32.xlu0 %v543, 4
        %v669 = vpop.permute.xlu0 %668
        %670 = vrot.lane.b32.xlu0 %v544, 4
        %v671 = vpop.permute.xlu0 %670
        %672 = vrot.lane.b32.xlu0 %v545, 4
        %v673 = vpop.permute.xlu0 %672
        %674 = vrot.lane.b32.xlu0 %v546, 4
        %v675 = vpop.permute.xlu0 %674
        %676 = vrot.lane.b32.xlu0 %v547, 4
        %v677 = vpop.permute.xlu0 %676
        %678 = vrot.lane.b32.xlu0 %v548, 4
        %v679 = vpop.permute.xlu0 %678
        %680 = vrot.lane.b32.xlu0 %v549, 4
        %v681 = vpop.permute.xlu0 %680
        %682 = vrot.lane.b32.xlu0 %v550, 4
        %v683 = vpop.permute.xlu0 %682
        %684 = vrot.lane.b32.xlu0 %v551, 4
        %v685 = vpop.permute.xlu0 %684
        %686 = vrot.lane.b32.xlu0 %v552, 4
        %v687 = vpop.permute.xlu0 %686
        %688 = vrot.lane.b32.xlu0 %v553, 4
        %v689 = vpop.permute.xlu0 %688
        %690 = vrot.lane.b32.xlu0 %v554, 4
        %v691 = vpop.permute.xlu0 %690
        %692 = vrot.lane.b32.xlu0 %v555, 4
        %v693 = vpop.permute.xlu0 %692
        %694 = vrot.lane.b32.xlu0 %v556, 4
        %v695 = vpop.permute.xlu0 %694
        %696 = vrot.lane.b32.xlu0 %v557, 4
        %v697 = vpop.permute.xlu0 %696
        %698 = vrot.lane.b32.xlu0 %v558, 4
        %v699 = vpop.permute.xlu0 %698
        %700 = vrot.lane.b32.xlu0 %v559, 4
        %v701 = vpop.permute.xlu0 %700
        %702 = vrot.lane.b32.xlu0 %v560, 4
        %v703 = vpop.permute.xlu0 %702
        %704 = vrot.lane.b32.xlu0 %v561, 4
        %v705 = vpop.permute.xlu0 %704
        %706 = vrot.lane.b32.xlu0 %v562, 4
        %v707 = vpop.permute.xlu0 %706
        %vm732 = vcmask 64544
        %733 = vst.msk [vmem:[#allocation3] sm:$0xff] %vm732, %v661
        %734 = vst.msk [vmem:[#allocation3 + $0x8] sm:$0xff] %vm732, %v663
        %735 = vst.msk [vmem:[#allocation3 + $0x10] sm:$0xff] %vm732, %v665
        %736 = vst.msk [vmem:[#allocation3 + $0x18] sm:$0xff] %vm732, %v667
        %737 = vst.msk [vmem:[#allocation3 + $0x20] sm:$0xff] %vm732, %v669
        %738 = vst.msk [vmem:[#allocation3 + $0x28] sm:$0xff] %vm732, %v671
        %739 = vst.msk [vmem:[#allocation3 + $0x30] sm:$0xff] %vm732, %v673
        %740 = vst.msk [vmem:[#allocation3 + $0x38] sm:$0xff] %vm732, %v675
        %741 = vst.msk [vmem:[#allocation3 + $0x40] sm:$0xff] %vm732, %v677
        %742 = vst.msk [vmem:[#allocation3 + $0x48] sm:$0xff] %vm732, %v679
        %743 = vst.msk [vmem:[#allocation3 + $0x50] sm:$0xff] %vm732, %v681
        %744 = vst.msk [vmem:[#allocation3 + $0x58] sm:$0xff] %vm732, %v683
        %745 = vst.msk [vmem:[#allocation3 + $0x60] sm:$0xff] %vm732, %v685
        %746 = vst.msk [vmem:[#allocation3 + $0x68] sm:$0xff] %vm732, %v687
        %747 = vst.msk [vmem:[#allocation3 + $0x70] sm:$0xff] %vm732, %v689
        %748 = vst.msk [vmem:[#allocation3 + $0x78] sm:$0xff] %vm732, %v691
        %749 = vst.msk [vmem:[#allocation3 + $0x80] sm:$0xff] %vm732, %v693
        %750 = vst.msk [vmem:[#allocation3 + $0x88] sm:$0xff] %vm732, %v695
        %751 = vst.msk [vmem:[#allocation3 + $0x90] sm:$0xff] %vm732, %v697
        %752 = vst.msk [vmem:[#allocation3 + $0x98] sm:$0xff] %vm732, %v699
        %753 = vst.msk [vmem:[#allocation3 + $0xa0] sm:$0xff] %vm732, %v701
        %754 = vst.msk [vmem:[#allocation3 + $0xa8] sm:$0xff] %vm732, %v703
        %755 = vst.msk [vmem:[#allocation3 + $0xb0] sm:$0xff] %vm732, %v705
        %756 = vst.msk [vmem:[#allocation3 + $0xb8] sm:$0xff] %vm732, %v707
        %v757 = vrot.slane %v539, 1
        %v758 = vrot.slane %v540, 1
        %v759 = vrot.slane %v541, 1
        %v760 = vrot.slane %v542, 1
        %v761 = vrot.slane %v543, 1
        %v762 = vrot.slane %v544, 1
        %v763 = vrot.slane %v545, 1
        %v764 = vrot.slane %v546, 1
        %v765 = vrot.slane %v547, 1
        %v766 = vrot.slane %v548, 1
        %v767 = vrot.slane %v549, 1
        %v768 = vrot.slane %v550, 1
        %v769 = vrot.slane %v551, 1
        %v770 = vrot.slane %v552, 1
        %v771 = vrot.slane %v553, 1
        %v772 = vrot.slane %v554, 1
        %v773 = vrot.slane %v555, 1
        %v774 = vrot.slane %v556, 1
        %v775 = vrot.slane %v557, 1
        %v776 = vrot.slane %v558, 1
        %v777 = vrot.slane %v559, 1
        %v778 = vrot.slane %v560, 1
        %v779 = vrot.slane %v561, 1
        %v780 = vrot.slane %v562, 1
        %vm781 = vcmp.lt.s32.totalorder %v440, 7
        %v782 = vsel %vm781, %v779, %v780
        %v783 = vsel %vm781, %v778, %v779
        %v784 = vsel %vm781, %v777, %v778
        %v785 = vsel %vm781, %v776, %v777
        %v786 = vsel %vm781, %v775, %v776
        %v787 = vsel %vm781, %v774, %v775
        %v788 = vsel %vm781, %v773, %v774
        %v789 = vsel %vm781, %v772, %v773
        %v790 = vsel %vm781, %v771, %v772
        %v791 = vsel %vm781, %v770, %v771
        %v792 = vsel %vm781, %v769, %v770
        %v793 = vsel %vm781, %v768, %v769
        %v794 = vsel %vm781, %v767, %v768
        %v795 = vsel %vm781, %v766, %v767
        %v796 = vsel %vm781, %v765, %v766
        %v797 = vsel %vm781, %v764, %v765
        %v798 = vsel %vm781, %v763, %v764
        %v799 = vsel %vm781, %v762, %v763
        %v800 = vsel %vm781, %v761, %v762
        %v801 = vsel %vm781, %v760, %v761
        %v802 = vsel %vm781, %v759, %v760
        %v803 = vsel %vm781, %v758, %v759
        %v804 = vsel %vm781, %v757, %v758
        %v805 = vsel %vm781, %v780, %v757
        %830 = vrot.lane.b32.xlu0 %v804, 8
        %v831 = vpop.permute.xlu0 %830
        %832 = vrot.lane.b32.xlu0 %v803, 8
        %v833 = vpop.permute.xlu0 %832
        %834 = vrot.lane.b32.xlu0 %v802, 8
        %v835 = vpop.permute.xlu0 %834
        %836 = vrot.lane.b32.xlu0 %v801, 8
        %v837 = vpop.permute.xlu0 %836
        %838 = vrot.lane.b32.xlu0 %v800, 8
        %v839 = vpop.permute.xlu0 %838
        %840 = vrot.lane.b32.xlu0 %v799, 8
        %v841 = vpop.permute.xlu0 %840
        %842 = vrot.lane.b32.xlu0 %v798, 8
        %v843 = vpop.permute.xlu0 %842
        %844 = vrot.lane.b32.xlu0 %v797, 8
        %v845 = vpop.permute.xlu0 %844
        %846 = vrot.lane.b32.xlu0 %v796, 8
        %v847 = vpop.permute.xlu0 %846
        %848 = vrot.lane.b32.xlu0 %v795, 8
        %v849 = vpop.permute.xlu0 %848
        %850 = vrot.lane.b32.xlu0 %v794, 8
        %v851 = vpop.permute.xlu0 %850
        %852 = vrot.lane.b32.xlu0 %v793, 8
        %v853 = vpop.permute.xlu0 %852
        %854 = vrot.lane.b32.xlu0 %v792, 8
        %v855 = vpop.permute.xlu0 %854
        %856 = vrot.lane.b32.xlu0 %v791, 8
        %v857 = vpop.permute.xlu0 %856
        %858 = vrot.lane.b32.xlu0 %v790, 8
        %v859 = vpop.permute.xlu0 %858
        %860 = vrot.lane.b32.xlu0 %v789, 8
        %v861 = vpop.permute.xlu0 %860
        %862 = vrot.lane.b32.xlu0 %v788, 8
        %v863 = vpop.permute.xlu0 %862
        %864 = vrot.lane.b32.xlu0 %v787, 8
        %v865 = vpop.permute.xlu0 %864
        %866 = vrot.lane.b32.xlu0 %v786, 8
        %v867 = vpop.permute.xlu0 %866
        %868 = vrot.lane.b32.xlu0 %v785, 8
        %v869 = vpop.permute.xlu0 %868
        %870 = vrot.lane.b32.xlu0 %v784, 8
        %v871 = vpop.permute.xlu0 %870
        %872 = vrot.lane.b32.xlu0 %v783, 8
        %v873 = vpop.permute.xlu0 %872
        %874 = vrot.lane.b32.xlu0 %v782, 8
        %v875 = vpop.permute.xlu0 %874
        %876 = vrot.lane.b32.xlu0 %v805, 8
        %v877 = vpop.permute.xlu0 %876
        %vm902 = vcmask 97344
        %903 = vst.msk [vmem:[#allocation3] sm:$0xff] %vm902, %v831
        %904 = vst.msk [vmem:[#allocation3 + $0x8] sm:$0xff] %vm902, %v833
        %905 = vst.msk [vmem:[#allocation3 + $0x10] sm:$0xff] %vm902, %v835
        %906 = vst.msk [vmem:[#allocation3 + $0x18] sm:$0xff] %vm902, %v837
        %907 = vst.msk [vmem:[#allocation3 + $0x20] sm:$0xff] %vm902, %v839
        %908 = vst.msk [vmem:[#allocation3 + $0x28] sm:$0xff] %vm902, %v841
        %909 = vst.msk [vmem:[#allocation3 + $0x30] sm:$0xff] %vm902, %v843
        %910 = vst.msk [vmem:[#allocation3 + $0x38] sm:$0xff] %vm902, %v845
        %911 = vst.msk [vmem:[#allocation3 + $0x40] sm:$0xff] %vm902, %v847
        %912 = vst.msk [vmem:[#allocation3 + $0x48] sm:$0xff] %vm902, %v849
        %913 = vst.msk [vmem:[#allocation3 + $0x50] sm:$0xff] %vm902, %v851
        %914 = vst.msk [vmem:[#allocation3 + $0x58] sm:$0xff] %vm902, %v853
        %915 = vst.msk [vmem:[#allocation3 + $0x60] sm:$0xff] %vm902, %v855
        %916 = vst.msk [vmem:[#allocation3 + $0x68] sm:$0xff] %vm902, %v857
        %917 = vst.msk [vmem:[#allocation3 + $0x70] sm:$0xff] %vm902, %v859
        %918 = vst.msk [vmem:[#allocation3 + $0x78] sm:$0xff] %vm902, %v861
        %919 = vst.msk [vmem:[#allocation3 + $0x80] sm:$0xff] %vm902, %v863
        %920 = vst.msk [vmem:[#allocation3 + $0x88] sm:$0xff] %vm902, %v865
        %921 = vst.msk [vmem:[#allocation3 + $0x90] sm:$0xff] %vm902, %v867
        %922 = vst.msk [vmem:[#allocation3 + $0x98] sm:$0xff] %vm902, %v869
        %923 = vst.msk [vmem:[#allocation3 + $0xa0] sm:$0xff] %vm902, %v871
        %924 = vst.msk [vmem:[#allocation3 + $0xa8] sm:$0xff] %vm902, %v873
        %925 = vst.msk [vmem:[#allocation3 + $0xb0] sm:$0xff] %vm902, %v875
        %926 = vst.msk [vmem:[#allocation3 + $0xb8] sm:$0xff] %vm902, %v877
        %v927 = vld [vmem:[%s476] sm:$0xff]
        %v928 = vld [vmem:[%s476 + $0x8] sm:$0xff]
        %v929 = vld [vmem:[%s476 + $0x10] sm:$0xff]
        %v930 = vld [vmem:[%s476 + $0x18] sm:$0xff]
        %v931 = vld [vmem:[%s476 + $0x20] sm:$0xff]
        %v932 = vld [vmem:[%s476 + $0x28] sm:$0xff]
        %v933 = vld [vmem:[%s476 + $0x30] sm:$0xff]
        %v934 = vld [vmem:[%s476 + $0x38] sm:$0xff]
        %v935 = vld [vmem:[%s476 + $0x40] sm:$0xff]
        %v936 = vld [vmem:[%s476 + $0x48] sm:$0xff]
        %v937 = vld [vmem:[%s476 + $0x50] sm:$0xff]
        %v938 = vld [vmem:[%s476 + $0x58] sm:$0xff]
        %v939 = vld [vmem:[%s476 + $0x60] sm:$0xff]
        %v940 = vld [vmem:[%s476 + $0x68] sm:$0xff]
        %v941 = vld [vmem:[%s476 + $0x70] sm:$0xff]
        %v942 = vld [vmem:[%s476 + $0x78] sm:$0xff]
        %v943 = vld [vmem:[%s476 + $0x80] sm:$0xff]
        %v944 = vld [vmem:[%s476 + $0x88] sm:$0xff]
        %v945 = vld [vmem:[%s476 + $0x90] sm:$0xff]
        %v946 = vld [vmem:[%s476 + $0x98] sm:$0xff]
        %v947 = vld [vmem:[%s476 + $0xa0] sm:$0xff]
        %v948 = vld [vmem:[%s476 + $0xa8] sm:$0xff]
        %v949 = vld [vmem:[%s476 + $0xb0] sm:$0xff]
        %v950 = vld [vmem:[%s476 + $0xb8] sm:$0xff]
        %v951 = vrot.slane %v927, 7
        %v952 = vrot.slane %v928, 7
        %v953 = vrot.slane %v929, 7
        %v954 = vrot.slane %v930, 7
        %v955 = vrot.slane %v931, 7
        %v956 = vrot.slane %v932, 7
        %v957 = vrot.slane %v933, 7
        %v958 = vrot.slane %v934, 7
        %v959 = vrot.slane %v935, 7
        %v960 = vrot.slane %v936, 7
        %v961 = vrot.slane %v937, 7
        %v962 = vrot.slane %v938, 7
        %v963 = vrot.slane %v939, 7
        %v964 = vrot.slane %v940, 7
        %v965 = vrot.slane %v941, 7
        %v966 = vrot.slane %v942, 7
        %v967 = vrot.slane %v943, 7
        %v968 = vrot.slane %v944, 7
        %v969 = vrot.slane %v945, 7
        %v970 = vrot.slane %v946, 7
        %v971 = vrot.slane %v947, 7
        %v972 = vrot.slane %v948, 7
        %v973 = vrot.slane %v949, 7
        %v974 = vrot.slane %v950, 7
        %v975 = vsel %vm587, %v973, %v974
        %v976 = vsel %vm587, %v972, %v973
        %v977 = vsel %vm587, %v971, %v972
        %v978 = vsel %vm587, %v970, %v971
        %v979 = vsel %vm587, %v969, %v970
        %v980 = vsel %vm587, %v968, %v969
        %v981 = vsel %vm587, %v967, %v968
        %v982 = vsel %vm587, %v966, %v967
        %v983 = vsel %vm587, %v965, %v966
        %v984 = vsel %vm587, %v964, %v965
        %v985 = vsel %vm587, %v963, %v964
        %v986 = vsel %vm587, %v962, %v963
        %v987 = vsel %vm587, %v961, %v962
        %v988 = vsel %vm587, %v960, %v961
        %v989 = vsel %vm587, %v959, %v960
        %v990 = vsel %vm587, %v958, %v959
        %v991 = vsel %vm587, %v957, %v958
        %v992 = vsel %vm587, %v956, %v957
        %v993 = vsel %vm587, %v955, %v956
        %v994 = vsel %vm587, %v954, %v955
        %v995 = vsel %vm587, %v953, %v954
        %v996 = vsel %vm587, %v952, %v953
        %v997 = vsel %vm587, %v951, %v952
        %v998 = vsel %vm587, %v974, %v951
        %1023 = vrot.lane.b32.xlu0 %v998, 12
        %v1024 = vpop.permute.xlu0 %1023
        %1025 = vrot.lane.b32.xlu0 %v997, 12
        %v1026 = vpop.permute.xlu0 %1025
        %1027 = vrot.lane.b32.xlu0 %v996, 12
        %v1028 = vpop.permute.xlu0 %1027
        %1029 = vrot.lane.b32.xlu0 %v995, 12
        %v1030 = vpop.permute.xlu0 %1029
        %1031 = vrot.lane.b32.xlu0 %v994, 12
        %v1032 = vpop.permute.xlu0 %1031
        %1033 = vrot.lane.b32.xlu0 %v993, 12
        %v1034 = vpop.permute.xlu0 %1033
        %1035 = vrot.lane.b32.xlu0 %v992, 12
        %v1036 = vpop.permute.xlu0 %1035
        %1037 = vrot.lane.b32.xlu0 %v991, 12
        %v1038 = vpop.permute.xlu0 %1037
        %1039 = vrot.lane.b32.xlu0 %v990, 12
        %v1040 = vpop.permute.xlu0 %1039
        %1041 = vrot.lane.b32.xlu0 %v989, 12
        %v1042 = vpop.permute.xlu0 %1041
        %1043 = vrot.lane.b32.xlu0 %v988, 12
        %v1044 = vpop.permute.xlu0 %1043
        %1045 = vrot.lane.b32.xlu0 %v987, 12
        %v1046 = vpop.permute.xlu0 %1045
        %1047 = vrot.lane.b32.xlu0 %v986, 12
        %v1048 = vpop.permute.xlu0 %1047
        %1049 = vrot.lane.b32.xlu0 %v985, 12
        %v1050 = vpop.permute.xlu0 %1049
        %1051 = vrot.lane.b32.xlu0 %v984, 12
        %v1052 = vpop.permute.xlu0 %1051
        %1053 = vrot.lane.b32.xlu0 %v983, 12
        %v1054 = vpop.permute.xlu0 %1053
        %1055 = vrot.lane.b32.xlu0 %v982, 12
        %v1056 = vpop.permute.xlu0 %1055
        %1057 = vrot.lane.b32.xlu0 %v981, 12
        %v1058 = vpop.permute.xlu0 %1057
        %1059 = vrot.lane.b32.xlu0 %v980, 12
        %v1060 = vpop.permute.xlu0 %1059
        %1061 = vrot.lane.b32.xlu0 %v979, 12
        %v1062 = vpop.permute.xlu0 %1061
        %1063 = vrot.lane.b32.xlu0 %v978, 12
        %v1064 = vpop.permute.xlu0 %1063
        %1065 = vrot.lane.b32.xlu0 %v977, 12
        %v1066 = vpop.permute.xlu0 %1065
        %1067 = vrot.lane.b32.xlu0 %v976, 12
        %v1068 = vpop.permute.xlu0 %1067
        %1069 = vrot.lane.b32.xlu0 %v975, 12
        %v1070 = vpop.permute.xlu0 %1069
        %vm1095 = vcmask 130144
        %1096 = vst.msk [vmem:[#allocation3] sm:$0xff] %vm1095, %v1024
        %1097 = vst.msk [vmem:[#allocation3 + $0x8] sm:$0xff] %vm1095, %v1026
        %1098 = vst.msk [vmem:[#allocation3 + $0x10] sm:$0xff] %vm1095, %v1028
        %1099 = vst.msk [vmem:[#allocation3 + $0x18] sm:$0xff] %vm1095, %v1030
        %1100 = vst.msk [vmem:[#allocation3 + $0x20] sm:$0xff] %vm1095, %v1032
        %1101 = vst.msk [vmem:[#allocation3 + $0x28] sm:$0xff] %vm1095, %v1034
        %1102 = vst.msk [vmem:[#allocation3 + $0x30] sm:$0xff] %vm1095, %v1036
        %1103 = vst.msk [vmem:[#allocation3 + $0x38] sm:$0xff] %vm1095, %v1038
        %1104 = vst.msk [vmem:[#allocation3 + $0x40] sm:$0xff] %vm1095, %v1040
        %1105 = vst.msk [vmem:[#allocation3 + $0x48] sm:$0xff] %vm1095, %v1042
        %1106 = vst.msk [vmem:[#allocation3 + $0x50] sm:$0xff] %vm1095, %v1044
        %1107 = vst.msk [vmem:[#allocation3 + $0x58] sm:$0xff] %vm1095, %v1046
        %1108 = vst.msk [vmem:[#allocation3 + $0x60] sm:$0xff] %vm1095, %v1048
        %1109 = vst.msk [vmem:[#allocation3 + $0x68] sm:$0xff] %vm1095, %v1050
        %1110 = vst.msk [vmem:[#allocation3 + $0x70] sm:$0xff] %vm1095, %v1052
        %1111 = vst.msk [vmem:[#allocation3 + $0x78] sm:$0xff] %vm1095, %v1054
        %1112 = vst.msk [vmem:[#allocation3 + $0x80] sm:$0xff] %vm1095, %v1056
        %1113 = vst.msk [vmem:[#allocation3 + $0x88] sm:$0xff] %vm1095, %v1058
        %1114 = vst.msk [vmem:[#allocation3 + $0x90] sm:$0xff] %vm1095, %v1060
        %1115 = vst.msk [vmem:[#allocation3 + $0x98] sm:$0xff] %vm1095, %v1062
        %1116 = vst.msk [vmem:[#allocation3 + $0xa0] sm:$0xff] %vm1095, %v1064
        %1117 = vst.msk [vmem:[#allocation3 + $0xa8] sm:$0xff] %vm1095, %v1066
        %1118 = vst.msk [vmem:[#allocation3 + $0xb0] sm:$0xff] %vm1095, %v1068
        %1119 = vst.msk [vmem:[#allocation3 + $0xb8] sm:$0xff] %vm1095, %v1070
        %1144 = vrot.lane.b32.xlu0 %v927, 16
        %v1145 = vpop.permute.xlu0 %1144
        %1146 = vrot.lane.b32.xlu0 %v928, 16
        %v1147 = vpop.permute.xlu0 %1146
        %1148 = vrot.lane.b32.xlu0 %v929, 16
        %v1149 = vpop.permute.xlu0 %1148
        %1150 = vrot.lane.b32.xlu0 %v930, 16
        %v1151 = vpop.permute.xlu0 %1150
        %1152 = vrot.lane.b32.xlu0 %v931, 16
        %v1153 = vpop.permute.xlu0 %1152
        %1154 = vrot.lane.b32.xlu0 %v932, 16
        %v1155 = vpop.permute.xlu0 %1154
        %1156 = vrot.lane.b32.xlu0 %v933, 16
        %v1157 = vpop.permute.xlu0 %1156
        %1158 = vrot.lane.b32.xlu0 %v934, 16
        %v1159 = vpop.permute.xlu0 %1158
        %1160 = vrot.lane.b32.xlu0 %v935, 16
        %v1161 = vpop.permute.xlu0 %1160
        %1162 = vrot.lane.b32.xlu0 %v936, 16
        %v1163 = vpop.permute.xlu0 %1162
        %1164 = vrot.lane.b32.xlu0 %v937, 16
        %v1165 = vpop.permute.xlu0 %1164
        %1166 = vrot.lane.b32.xlu0 %v938, 16
        %v1167 = vpop.permute.xlu0 %1166
        %1168 = vrot.lane.b32.xlu0 %v939, 16
        %v1169 = vpop.permute.xlu0 %1168
        %1170 = vrot.lane.b32.xlu0 %v940, 16
        %v1171 = vpop.permute.xlu0 %1170
        %1172 = vrot.lane.b32.xlu0 %v941, 16
        %v1173 = vpop.permute.xlu0 %1172
        %1174 = vrot.lane.b32.xlu0 %v942, 16
        %v1175 = vpop.permute.xlu0 %1174
        %1176 = vrot.lane.b32.xlu0 %v943, 16
        %v1177 = vpop.permute.xlu0 %1176
        %1178 = vrot.lane.b32.xlu0 %v944, 16
        %v1179 = vpop.permute.xlu0 %1178
        %1180 = vrot.lane.b32.xlu0 %v945, 16
        %v1181 = vpop.permute.xlu0 %1180
        %1182 = vrot.lane.b32.xlu0 %v946, 16
        %v1183 = vpop.permute.xlu0 %1182
        %1184 = vrot.lane.b32.xlu0 %v947, 16
        %v1185 = vpop.permute.xlu0 %1184
        %1186 = vrot.lane.b32.xlu0 %v948, 16
        %v1187 = vpop.permute.xlu0 %1186
        %1188 = vrot.lane.b32.xlu0 %v949, 16
        %v1189 = vpop.permute.xlu0 %1188
        %1190 = vrot.lane.b32.xlu0 %v950, 16
        %v1191 = vpop.permute.xlu0 %1190
        %vm1216 = vcmask 162944
        %1217 = vst.msk [vmem:[#allocation3] sm:$0xff] %vm1216, %v1145
        %1218 = vst.msk [vmem:[#allocation3 + $0x8] sm:$0xff] %vm1216, %v1147
        %1219 = vst.msk [vmem:[#allocation3 + $0x10] sm:$0xff] %vm1216, %v1149
        %1220 = vst.msk [vmem:[#allocation3 + $0x18] sm:$0xff] %vm1216, %v1151
        %1221 = vst.msk [vmem:[#allocation3 + $0x20] sm:$0xff] %vm1216, %v1153
        %1222 = vst.msk [vmem:[#allocation3 + $0x28] sm:$0xff] %vm1216, %v1155
        %1223 = vst.msk [vmem:[#allocation3 + $0x30] sm:$0xff] %vm1216, %v1157
        %1224 = vst.msk [vmem:[#allocation3 + $0x38] sm:$0xff] %vm1216, %v1159
        %1225 = vst.msk [vmem:[#allocation3 + $0x40] sm:$0xff] %vm1216, %v1161
        %1226 = vst.msk [vmem:[#allocation3 + $0x48] sm:$0xff] %vm1216, %v1163
        %1227 = vst.msk [vmem:[#allocation3 + $0x50] sm:$0xff] %vm1216, %v1165
        %1228 = vst.msk [vmem:[#allocation3 + $0x58] sm:$0xff] %vm1216, %v1167
        %1229 = vst.msk [vmem:[#allocation3 + $0x60] sm:$0xff] %vm1216, %v1169
        %1230 = vst.msk [vmem:[#allocation3 + $0x68] sm:$0xff] %vm1216, %v1171
        %1231 = vst.msk [vmem:[#allocation3 + $0x70] sm:$0xff] %vm1216, %v1173
        %1232 = vst.msk [vmem:[#allocation3 + $0x78] sm:$0xff] %vm1216, %v1175
        %1233 = vst.msk [vmem:[#allocation3 + $0x80] sm:$0xff] %vm1216, %v1177
        %1234 = vst.msk [vmem:[#allocation3 + $0x88] sm:$0xff] %vm1216, %v1179
        %1235 = vst.msk [vmem:[#allocation3 + $0x90] sm:$0xff] %vm1216, %v1181
        %1236 = vst.msk [vmem:[#allocation3 + $0x98] sm:$0xff] %vm1216, %v1183
        %1237 = vst.msk [vmem:[#allocation3 + $0xa0] sm:$0xff] %vm1216, %v1185
        %1238 = vst.msk [vmem:[#allocation3 + $0xa8] sm:$0xff] %vm1216, %v1187
        %1239 = vst.msk [vmem:[#allocation3 + $0xb0] sm:$0xff] %vm1216, %v1189
        %1240 = vst.msk [vmem:[#allocation3 + $0xb8] sm:$0xff] %vm1216, %v1191
        %v1241 = vrot.slane %v927, 1
        %v1242 = vrot.slane %v928, 1
        %v1243 = vrot.slane %v929, 1
        %v1244 = vrot.slane %v930, 1
        %v1245 = vrot.slane %v931, 1
        %v1246 = vrot.slane %v932, 1
        %v1247 = vrot.slane %v933, 1
        %v1248 = vrot.slane %v934, 1
        %v1249 = vrot.slane %v935, 1
        %v1250 = vrot.slane %v936, 1
        %v1251 = vrot.slane %v937, 1
        %v1252 = vrot.slane %v938, 1
        %v1253 = vrot.slane %v939, 1
        %v1254 = vrot.slane %v940, 1
        %v1255 = vrot.slane %v941, 1
        %v1256 = vrot.slane %v942, 1
        %v1257 = vrot.slane %v943, 1
        %v1258 = vrot.slane %v944, 1
        %v1259 = vrot.slane %v945, 1
        %v1260 = vrot.slane %v946, 1
        %v1261 = vrot.slane %v947, 1
        %v1262 = vrot.slane %v948, 1
        %v1263 = vrot.slane %v949, 1
        %v1264 = vrot.slane %v950, 1
        %v1265 = vsel %vm781, %v1263, %v1264
        %v1266 = vsel %vm781, %v1262, %v1263
        %v1267 = vsel %vm781, %v1261, %v1262
        %v1268 = vsel %vm781, %v1260, %v1261
        %v1269 = vsel %vm781, %v1259, %v1260
        %v1270 = vsel %vm781, %v1258, %v1259
        %v1271 = vsel %vm781, %v1257, %v1258
        %v1272 = vsel %vm781, %v1256, %v1257
        %v1273 = vsel %vm781, %v1255, %v1256
        %v1274 = vsel %vm781, %v1254, %v1255
        %v1275 = vsel %vm781, %v1253, %v1254
        %v1276 = vsel %vm781, %v1252, %v1253
        %v1277 = vsel %vm781, %v1251, %v1252
        %v1278 = vsel %vm781, %v1250, %v1251
        %v1279 = vsel %vm781, %v1249, %v1250
        %v1280 = vsel %vm781, %v1248, %v1249
        %v1281 = vsel %vm781, %v1247, %v1248
        %v1282 = vsel %vm781, %v1246, %v1247
        %v1283 = vsel %vm781, %v1245, %v1246
        %v1284 = vsel %vm781, %v1244, %v1245
        %v1285 = vsel %vm781, %v1243, %v1244
        %v1286 = vsel %vm781, %v1242, %v1243
        %v1287 = vsel %vm781, %v1241, %v1242
        %v1288 = vsel %vm781, %v1264, %v1241
        %1313 = vrot.lane.b32.xlu0 %v1287, 20
        %v1314 = vpop.permute.xlu0 %1313
        %1315 = vrot.lane.b32.xlu0 %v1286, 20
        %v1316 = vpop.permute.xlu0 %1315
        %1317 = vrot.lane.b32.xlu0 %v1285, 20
        %v1318 = vpop.permute.xlu0 %1317
        %1319 = vrot.lane.b32.xlu0 %v1284, 20
        %v1320 = vpop.permute.xlu0 %1319
        %1321 = vrot.lane.b32.xlu0 %v1283, 20
        %v1322 = vpop.permute.xlu0 %1321
        %1323 = vrot.lane.b32.xlu0 %v1282, 20
        %v1324 = vpop.permute.xlu0 %1323
        %1325 = vrot.lane.b32.xlu0 %v1281, 20
        %v1326 = vpop.permute.xlu0 %1325
        %1327 = vrot.lane.b32.xlu0 %v1280, 20
        %v1328 = vpop.permute.xlu0 %1327
        %1329 = vrot.lane.b32.xlu0 %v1279, 20
        %v1330 = vpop.permute.xlu0 %1329
        %1331 = vrot.lane.b32.xlu0 %v1278, 20
        %v1332 = vpop.permute.xlu0 %1331
        %1333 = vrot.lane.b32.xlu0 %v1277, 20
        %v1334 = vpop.permute.xlu0 %1333
        %1335 = vrot.lane.b32.xlu0 %v1276, 20
        %v1336 = vpop.permute.xlu0 %1335
        %1337 = vrot.lane.b32.xlu0 %v1275, 20
        %v1338 = vpop.permute.xlu0 %1337
        %1339 = vrot.lane.b32.xlu0 %v1274, 20
        %v1340 = vpop.permute.xlu0 %1339
        %1341 = vrot.lane.b32.xlu0 %v1273, 20
        %v1342 = vpop.permute.xlu0 %1341
        %1343 = vrot.lane.b32.xlu0 %v1272, 20
        %v1344 = vpop.permute.xlu0 %1343
        %1345 = vrot.lane.b32.xlu0 %v1271, 20
        %v1346 = vpop.permute.xlu0 %1345
        %1347 = vrot.lane.b32.xlu0 %v1270, 20
        %v1348 = vpop.permute.xlu0 %1347
        %1349 = vrot.lane.b32.xlu0 %v1269, 20
        %v1350 = vpop.permute.xlu0 %1349
        %1351 = vrot.lane.b32.xlu0 %v1268, 20
        %v1352 = vpop.permute.xlu0 %1351
        %1353 = vrot.lane.b32.xlu0 %v1267, 20
        %v1354 = vpop.permute.xlu0 %1353
        %1355 = vrot.lane.b32.xlu0 %v1266, 20
        %v1356 = vpop.permute.xlu0 %1355
        %1357 = vrot.lane.b32.xlu0 %v1265, 20
        %v1358 = vpop.permute.xlu0 %1357
        %1359 = vrot.lane.b32.xlu0 %v1288, 20
        %v1360 = vpop.permute.xlu0 %1359
        %vm1385 = vcmask 195744
        %1386 = vst.msk [vmem:[#allocation3] sm:$0xff] %vm1385, %v1314
        %1387 = vst.msk [vmem:[#allocation3 + $0x8] sm:$0xff] %vm1385, %v1316
        %1388 = vst.msk [vmem:[#allocation3 + $0x10] sm:$0xff] %vm1385, %v1318
        %1389 = vst.msk [vmem:[#allocation3 + $0x18] sm:$0xff] %vm1385, %v1320
        %1390 = vst.msk [vmem:[#allocation3 + $0x20] sm:$0xff] %vm1385, %v1322
        %1391 = vst.msk [vmem:[#allocation3 + $0x28] sm:$0xff] %vm1385, %v1324
        %1392 = vst.msk [vmem:[#allocation3 + $0x30] sm:$0xff] %vm1385, %v1326
        %1393 = vst.msk [vmem:[#allocation3 + $0x38] sm:$0xff] %vm1385, %v1328
        %1394 = vst.msk [vmem:[#allocation3 + $0x40] sm:$0xff] %vm1385, %v1330
        %1395 = vst.msk [vmem:[#allocation3 + $0x48] sm:$0xff] %vm1385, %v1332
        %1396 = vst.msk [vmem:[#allocation3 + $0x50] sm:$0xff] %vm1385, %v1334
        %1397 = vst.msk [vmem:[#allocation3 + $0x58] sm:$0xff] %vm1385, %v1336
        %1398 = vst.msk [vmem:[#allocation3 + $0x60] sm:$0xff] %vm1385, %v1338
        %1399 = vst.msk [vmem:[#allocation3 + $0x68] sm:$0xff] %vm1385, %v1340
        %1400 = vst.msk [vmem:[#allocation3 + $0x70] sm:$0xff] %vm1385, %v1342
        %1401 = vst.msk [vmem:[#allocation3 + $0x78] sm:$0xff] %vm1385, %v1344
        %1402 = vst.msk [vmem:[#allocation3 + $0x80] sm:$0xff] %vm1385, %v1346
        %1403 = vst.msk [vmem:[#allocation3 + $0x88] sm:$0xff] %vm1385, %v1348
        %1404 = vst.msk [vmem:[#allocation3 + $0x90] sm:$0xff] %vm1385, %v1350
        %1405 = vst.msk [vmem:[#allocation3 + $0x98] sm:$0xff] %vm1385, %v1352
        %1406 = vst.msk [vmem:[#allocation3 + $0xa0] sm:$0xff] %vm1385, %v1354
        %1407 = vst.msk [vmem:[#allocation3 + $0xa8] sm:$0xff] %vm1385, %v1356
        %1408 = vst.msk [vmem:[#allocation3 + $0xb0] sm:$0xff] %vm1385, %v1358
        %1409 = vst.msk [vmem:[#allocation3 + $0xb8] sm:$0xff] %vm1385, %v1360
        %s1410 = scalar_lea.vmem [#allocation2], 48
        %v1411 = vld [vmem:[%s1410] sm:$0xff]
        %v1412 = vld [vmem:[%s1410 + $0x8] sm:$0xff]
        %v1413 = vld [vmem:[%s1410 + $0x10] sm:$0xff]
        %v1414 = vld [vmem:[%s1410 + $0x18] sm:$0xff]
        %v1415 = vld [vmem:[%s1410 + $0x20] sm:$0xff]
        %v1416 = vld [vmem:[%s1410 + $0x28] sm:$0xff]
        %v1417 = vld [vmem:[%s1410 + $0x30] sm:$0xff]
        %v1418 = vld [vmem:[%s1410 + $0x38] sm:$0xff]
        %v1419 = vld [vmem:[%s1410 + $0x40] sm:$0xff]
        %v1420 = vld [vmem:[%s1410 + $0x48] sm:$0xff]
        %v1421 = vld [vmem:[%s1410 + $0x50] sm:$0xff]
        %v1422 = vld [vmem:[%s1410 + $0x58] sm:$0xff]
        %v1423 = vld [vmem:[%s1410 + $0x60] sm:$0xff]
        %v1424 = vld [vmem:[%s1410 + $0x68] sm:$0xff]
        %v1425 = vld [vmem:[%s1410 + $0x70] sm:$0xff]
        %v1426 = vld [vmem:[%s1410 + $0x78] sm:$0xff]
        %v1427 = vld [vmem:[%s1410 + $0x80] sm:$0xff]
        %v1428 = vld [vmem:[%s1410 + $0x88] sm:$0xff]
        %v1429 = vld [vmem:[%s1410 + $0x90] sm:$0xff]
        %v1430 = vld [vmem:[%s1410 + $0x98] sm:$0xff]
        %v1431 = vld [vmem:[%s1410 + $0xa0] sm:$0xff]
        %v1432 = vld [vmem:[%s1410 + $0xa8] sm:$0xff]
        %v1433 = vld [vmem:[%s1410 + $0xb0] sm:$0xff]
        %v1434 = vld [vmem:[%s1410 + $0xb8] sm:$0xff]
        %v1435 = vrot.slane %v1411, 7
        %v1436 = vrot.slane %v1412, 7
        %v1437 = vrot.slane %v1413, 7
        %v1438 = vrot.slane %v1414, 7
        %v1439 = vrot.slane %v1415, 7
        %v1440 = vrot.slane %v1416, 7
        %v1441 = vrot.slane %v1417, 7
        %v1442 = vrot.slane %v1418, 7
        %v1443 = vrot.slane %v1419, 7
        %v1444 = vrot.slane %v1420, 7
        %v1445 = vrot.slane %v1421, 7
        %v1446 = vrot.slane %v1422, 7
        %v1447 = vrot.slane %v1423, 7
        %v1448 = vrot.slane %v1424, 7
        %v1449 = vrot.slane %v1425, 7
        %v1450 = vrot.slane %v1426, 7
        %v1451 = vrot.slane %v1427, 7
        %v1452 = vrot.slane %v1428, 7
        %v1453 = vrot.slane %v1429, 7
        %v1454 = vrot.slane %v1430, 7
        %v1455 = vrot.slane %v1431, 7
        %v1456 = vrot.slane %v1432, 7
        %v1457 = vrot.slane %v1433, 7
        %v1458 = vrot.slane %v1434, 7
        %v1459 = vsel %vm587, %v1457, %v1458
        %v1460 = vsel %vm587, %v1456, %v1457
        %v1461 = vsel %vm587, %v1455, %v1456
        %v1462 = vsel %vm587, %v1454, %v1455
        %v1463 = vsel %vm587, %v1453, %v1454
        %v1464 = vsel %vm587, %v1452, %v1453
        %v1465 = vsel %vm587, %v1451, %v1452
        %v1466 = vsel %vm587, %v1450, %v1451
        %v1467 = vsel %vm587, %v1449, %v1450
        %v1468 = vsel %vm587, %v1448, %v1449
        %v1469 = vsel %vm587, %v1447, %v1448
        %v1470 = vsel %vm587, %v1446, %v1447
        %v1471 = vsel %vm587, %v1445, %v1446
        %v1472 = vsel %vm587, %v1444, %v1445
        %v1473 = vsel %vm587, %v1443, %v1444
        %v1474 = vsel %vm587, %v1442, %v1443
        %v1475 = vsel %vm587, %v1441, %v1442
        %v1476 = vsel %vm587, %v1440, %v1441
        %v1477 = vsel %vm587, %v1439, %v1440
        %v1478 = vsel %vm587, %v1438, %v1439
        %v1479 = vsel %vm587, %v1437, %v1438
        %v1480 = vsel %vm587, %v1436, %v1437
        %v1481 = vsel %vm587, %v1435, %v1436
        %v1482 = vsel %vm587, %v1458, %v1435
        %1507 = vrot.lane.b32.xlu0 %v1482, 24
        %v1508 = vpop.permute.xlu0 %1507
        %1509 = vrot.lane.b32.xlu0 %v1481, 24
        %v1510 = vpop.permute.xlu0 %1509
        %1511 = vrot.lane.b32.xlu0 %v1480, 24
        %v1512 = vpop.permute.xlu0 %1511
        %1513 = vrot.lane.b32.xlu0 %v1479, 24
        %v1514 = vpop.permute.xlu0 %1513
        %1515 = vrot.lane.b32.xlu0 %v1478, 24
        %v1516 = vpop.permute.xlu0 %1515
        %1517 = vrot.lane.b32.xlu0 %v1477, 24
        %v1518 = vpop.permute.xlu0 %1517
        %1519 = vrot.lane.b32.xlu0 %v1476, 24
        %v1520 = vpop.permute.xlu0 %1519
        %1521 = vrot.lane.b32.xlu0 %v1475, 24
        %v1522 = vpop.permute.xlu0 %1521
        %1523 = vrot.lane.b32.xlu0 %v1474, 24
        %v1524 = vpop.permute.xlu0 %1523
        %1525 = vrot.lane.b32.xlu0 %v1473, 24
        %v1526 = vpop.permute.xlu0 %1525
        %1527 = vrot.lane.b32.xlu0 %v1472, 24
        %v1528 = vpop.permute.xlu0 %1527
        %1529 = vrot.lane.b32.xlu0 %v1471, 24
        %v1530 = vpop.permute.xlu0 %1529
        %1531 = vrot.lane.b32.xlu0 %v1470, 24
        %v1532 = vpop.permute.xlu0 %1531
        %1533 = vrot.lane.b32.xlu0 %v1469, 24
        %v1534 = vpop.permute.xlu0 %1533
        %1535 = vrot.lane.b32.xlu0 %v1468, 24
        %v1536 = vpop.permute.xlu0 %1535
        %1537 = vrot.lane.b32.xlu0 %v1467, 24
        %v1538 = vpop.permute.xlu0 %1537
        %1539 = vrot.lane.b32.xlu0 %v1466, 24
        %v1540 = vpop.permute.xlu0 %1539
        %1541 = vrot.lane.b32.xlu0 %v1465, 24
        %v1542 = vpop.permute.xlu0 %1541
        %1543 = vrot.lane.b32.xlu0 %v1464, 24
        %v1544 = vpop.permute.xlu0 %1543
        %1545 = vrot.lane.b32.xlu0 %v1463, 24
        %v1546 = vpop.permute.xlu0 %1545
        %1547 = vrot.lane.b32.xlu0 %v1462, 24
        %v1548 = vpop.permute.xlu0 %1547
        %1549 = vrot.lane.b32.xlu0 %v1461, 24
        %v1550 = vpop.permute.xlu0 %1549
        %1551 = vrot.lane.b32.xlu0 %v1460, 24
        %v1552 = vpop.permute.xlu0 %1551
        %1553 = vrot.lane.b32.xlu0 %v1459, 24
        %v1554 = vpop.permute.xlu0 %1553
        %vm1579 = vcmask 228544
        %1580 = vst.msk [vmem:[#allocation3] sm:$0xff] %vm1579, %v1508
        %1581 = vst.msk [vmem:[#allocation3 + $0x8] sm:$0xff] %vm1579, %v1510
        %1582 = vst.msk [vmem:[#allocation3 + $0x10] sm:$0xff] %vm1579, %v1512
        %1583 = vst.msk [vmem:[#allocation3 + $0x18] sm:$0xff] %vm1579, %v1514
        %1584 = vst.msk [vmem:[#allocation3 + $0x20] sm:$0xff] %vm1579, %v1516
        %1585 = vst.msk [vmem:[#allocation3 + $0x28] sm:$0xff] %vm1579, %v1518
        %1586 = vst.msk [vmem:[#allocation3 + $0x30] sm:$0xff] %vm1579, %v1520
        %1587 = vst.msk [vmem:[#allocation3 + $0x38] sm:$0xff] %vm1579, %v1522
        %1588 = vst.msk [vmem:[#allocation3 + $0x40] sm:$0xff] %vm1579, %v1524
        %1589 = vst.msk [vmem:[#allocation3 + $0x48] sm:$0xff] %vm1579, %v1526
        %1590 = vst.msk [vmem:[#allocation3 + $0x50] sm:$0xff] %vm1579, %v1528
        %1591 = vst.msk [vmem:[#allocation3 + $0x58] sm:$0xff] %vm1579, %v1530
        %1592 = vst.msk [vmem:[#allocation3 + $0x60] sm:$0xff] %vm1579, %v1532
        %1593 = vst.msk [vmem:[#allocation3 + $0x68] sm:$0xff] %vm1579, %v1534
        %1594 = vst.msk [vmem:[#allocation3 + $0x70] sm:$0xff] %vm1579, %v1536
        %1595 = vst.msk [vmem:[#allocation3 + $0x78] sm:$0xff] %vm1579, %v1538
        %1596 = vst.msk [vmem:[#allocation3 + $0x80] sm:$0xff] %vm1579, %v1540
        %1597 = vst.msk [vmem:[#allocation3 + $0x88] sm:$0xff] %vm1579, %v1542
        %1598 = vst.msk [vmem:[#allocation3 + $0x90] sm:$0xff] %vm1579, %v1544
        %1599 = vst.msk [vmem:[#allocation3 + $0x98] sm:$0xff] %vm1579, %v1546
        %1600 = vst.msk [vmem:[#allocation3 + $0xa0] sm:$0xff] %vm1579, %v1548
        %1601 = vst.msk [vmem:[#allocation3 + $0xa8] sm:$0xff] %vm1579, %v1550
        %1602 = vst.msk [vmem:[#allocation3 + $0xb0] sm:$0xff] %vm1579, %v1552
        %1603 = vst.msk [vmem:[#allocation3 + $0xb8] sm:$0xff] %vm1579, %v1554
        %1628 = vrot.lane.b32.xlu0 %v1411, 28
        %v1629 = vpop.permute.xlu0 %1628
        %1630 = vrot.lane.b32.xlu0 %v1412, 28
        %v1631 = vpop.permute.xlu0 %1630
        %1632 = vrot.lane.b32.xlu0 %v1413, 28
        %v1633 = vpop.permute.xlu0 %1632
        %1634 = vrot.lane.b32.xlu0 %v1414, 28
        %v1635 = vpop.permute.xlu0 %1634
        %1636 = vrot.lane.b32.xlu0 %v1415, 28
        %v1637 = vpop.permute.xlu0 %1636
        %1638 = vrot.lane.b32.xlu0 %v1416, 28
        %v1639 = vpop.permute.xlu0 %1638
        %1640 = vrot.lane.b32.xlu0 %v1417, 28
        %v1641 = vpop.permute.xlu0 %1640
        %1642 = vrot.lane.b32.xlu0 %v1418, 28
        %v1643 = vpop.permute.xlu0 %1642
        %1644 = vrot.lane.b32.xlu0 %v1419, 28
        %v1645 = vpop.permute.xlu0 %1644
        %1646 = vrot.lane.b32.xlu0 %v1420, 28
        %v1647 = vpop.permute.xlu0 %1646
        %1648 = vrot.lane.b32.xlu0 %v1421, 28
        %v1649 = vpop.permute.xlu0 %1648
        %1650 = vrot.lane.b32.xlu0 %v1422, 28
        %v1651 = vpop.permute.xlu0 %1650
        %1652 = vrot.lane.b32.xlu0 %v1423, 28
        %v1653 = vpop.permute.xlu0 %1652
        %1654 = vrot.lane.b32.xlu0 %v1424, 28
        %v1655 = vpop.permute.xlu0 %1654
        %1656 = vrot.lane.b32.xlu0 %v1425, 28
        %v1657 = vpop.permute.xlu0 %1656
        %1658 = vrot.lane.b32.xlu0 %v1426, 28
        %v1659 = vpop.permute.xlu0 %1658
        %1660 = vrot.lane.b32.xlu0 %v1427, 28
        %v1661 = vpop.permute.xlu0 %1660
        %1662 = vrot.lane.b32.xlu0 %v1428, 28
        %v1663 = vpop.permute.xlu0 %1662
        %1664 = vrot.lane.b32.xlu0 %v1429, 28
        %v1665 = vpop.permute.xlu0 %1664
        %1666 = vrot.lane.b32.xlu0 %v1430, 28
        %v1667 = vpop.permute.xlu0 %1666
        %1668 = vrot.lane.b32.xlu0 %v1431, 28
        %v1669 = vpop.permute.xlu0 %1668
        %1670 = vrot.lane.b32.xlu0 %v1432, 28
        %v1671 = vpop.permute.xlu0 %1670
        %1672 = vrot.lane.b32.xlu0 %v1433, 28
        %v1673 = vpop.permute.xlu0 %1672
        %1674 = vrot.lane.b32.xlu0 %v1434, 28
        %v1675 = vpop.permute.xlu0 %1674
        %vm1700 = vcmask 261344
        %1701 = vst.msk [vmem:[#allocation3] sm:$0xff] %vm1700, %v1629
        %1702 = vst.msk [vmem:[#allocation3 + $0x8] sm:$0xff] %vm1700, %v1631
        %1703 = vst.msk [vmem:[#allocation3 + $0x10] sm:$0xff] %vm1700, %v1633
        %1704 = vst.msk [vmem:[#allocation3 + $0x18] sm:$0xff] %vm1700, %v1635
        %1705 = vst.msk [vmem:[#allocation3 + $0x20] sm:$0xff] %vm1700, %v1637
        %1706 = vst.msk [vmem:[#allocation3 + $0x28] sm:$0xff] %vm1700, %v1639
        %1707 = vst.msk [vmem:[#allocation3 + $0x30] sm:$0xff] %vm1700, %v1641
        %1708 = vst.msk [vmem:[#allocation3 + $0x38] sm:$0xff] %vm1700, %v1643
        %1709 = vst.msk [vmem:[#allocation3 + $0x40] sm:$0xff] %vm1700, %v1645
        %1710 = vst.msk [vmem:[#allocation3 + $0x48] sm:$0xff] %vm1700, %v1647
        %1711 = vst.msk [vmem:[#allocation3 + $0x50] sm:$0xff] %vm1700, %v1649
        %1712 = vst.msk [vmem:[#allocation3 + $0x58] sm:$0xff] %vm1700, %v1651
        %1713 = vst.msk [vmem:[#allocation3 + $0x60] sm:$0xff] %vm1700, %v1653
        %1714 = vst.msk [vmem:[#allocation3 + $0x68] sm:$0xff] %vm1700, %v1655
        %1715 = vst.msk [vmem:[#allocation3 + $0x70] sm:$0xff] %vm1700, %v1657
        %1716 = vst.msk [vmem:[#allocation3 + $0x78] sm:$0xff] %vm1700, %v1659
        %1717 = vst.msk [vmem:[#allocation3 + $0x80] sm:$0xff] %vm1700, %v1661
        %1718 = vst.msk [vmem:[#allocation3 + $0x88] sm:$0xff] %vm1700, %v1663
        %1719 = vst.msk [vmem:[#allocation3 + $0x90] sm:$0xff] %vm1700, %v1665
        %1720 = vst.msk [vmem:[#allocation3 + $0x98] sm:$0xff] %vm1700, %v1667
        %1721 = vst.msk [vmem:[#allocation3 + $0xa0] sm:$0xff] %vm1700, %v1669
        %1722 = vst.msk [vmem:[#allocation3 + $0xa8] sm:$0xff] %vm1700, %v1671
        %1723 = vst.msk [vmem:[#allocation3 + $0xb0] sm:$0xff] %vm1700, %v1673
        %1724 = vst.msk [vmem:[#allocation3 + $0xb8] sm:$0xff] %vm1700, %v1675
        %v1725 = vrot.slane %v1411, 1
        %v1726 = vrot.slane %v1412, 1
        %v1727 = vrot.slane %v1413, 1
        %v1728 = vrot.slane %v1414, 1
        %v1729 = vrot.slane %v1415, 1
        %v1730 = vrot.slane %v1416, 1
        %v1731 = vrot.slane %v1417, 1
        %v1732 = vrot.slane %v1418, 1
        %v1733 = vrot.slane %v1419, 1
        %v1734 = vrot.slane %v1420, 1
        %v1735 = vrot.slane %v1421, 1
        %v1736 = vrot.slane %v1422, 1
        %v1737 = vrot.slane %v1423, 1
        %v1738 = vrot.slane %v1424, 1
        %v1739 = vrot.slane %v1425, 1
        %v1740 = vrot.slane %v1426, 1
        %v1741 = vrot.slane %v1427, 1
        %v1742 = vrot.slane %v1428, 1
        %v1743 = vrot.slane %v1429, 1
        %v1744 = vrot.slane %v1430, 1
        %v1745 = vrot.slane %v1431, 1
        %v1746 = vrot.slane %v1432, 1
        %v1747 = vrot.slane %v1433, 1
        %v1748 = vrot.slane %v1434, 1
        %v1749 = vsel %vm781, %v1747, %v1748
        %v1750 = vsel %vm781, %v1746, %v1747
        %v1751 = vsel %vm781, %v1745, %v1746
        %v1752 = vsel %vm781, %v1744, %v1745
        %v1753 = vsel %vm781, %v1743, %v1744
        %v1754 = vsel %vm781, %v1742, %v1743
        %v1755 = vsel %vm781, %v1741, %v1742
        %v1756 = vsel %vm781, %v1740, %v1741
        %v1757 = vsel %vm781, %v1739, %v1740
        %v1758 = vsel %vm781, %v1738, %v1739
        %v1759 = vsel %vm781, %v1737, %v1738
        %v1760 = vsel %vm781, %v1736, %v1737
        %v1761 = vsel %vm781, %v1735, %v1736
        %v1762 = vsel %vm781, %v1734, %v1735
        %v1763 = vsel %vm781, %v1733, %v1734
        %v1764 = vsel %vm781, %v1732, %v1733
        %v1765 = vsel %vm781, %v1731, %v1732
        %v1766 = vsel %vm781, %v1730, %v1731
        %v1767 = vsel %vm781, %v1729, %v1730
        %v1768 = vsel %vm781, %v1728, %v1729
        %v1769 = vsel %vm781, %v1727, %v1728
        %v1770 = vsel %vm781, %v1726, %v1727
        %v1771 = vsel %vm781, %v1725, %v1726
        %v1772 = vsel %vm781, %v1748, %v1725
        %1797 = vrot.lane.b32.xlu0 %v1771, 32
        %v1798 = vpop.permute.xlu0 %1797
        %1799 = vrot.lane.b32.xlu0 %v1770, 32
        %v1800 = vpop.permute.xlu0 %1799
        %1801 = vrot.lane.b32.xlu0 %v1769, 32
        %v1802 = vpop.permute.xlu0 %1801
        %1803 = vrot.lane.b32.xlu0 %v1768, 32
        %v1804 = vpop.permute.xlu0 %1803
        %1805 = vrot.lane.b32.xlu0 %v1767, 32
        %v1806 = vpop.permute.xlu0 %1805
        %1807 = vrot.lane.b32.xlu0 %v1766, 32
        %v1808 = vpop.permute.xlu0 %1807
        %1809 = vrot.lane.b32.xlu0 %v1765, 32
        %v1810 = vpop.permute.xlu0 %1809
        %1811 = vrot.lane.b32.xlu0 %v1764, 32
        %v1812 = vpop.permute.xlu0 %1811
        %1813 = vrot.lane.b32.xlu0 %v1763, 32
        %v1814 = vpop.permute.xlu0 %1813
        %1815 = vrot.lane.b32.xlu0 %v1762, 32
        %v1816 = vpop.permute.xlu0 %1815
        %1817 = vrot.lane.b32.xlu0 %v1761, 32
        %v1818 = vpop.permute.xlu0 %1817
        %1819 = vrot.lane.b32.xlu0 %v1760, 32
        %v1820 = vpop.permute.xlu0 %1819
        %1821 = vrot.lane.b32.xlu0 %v1759, 32
        %v1822 = vpop.permute.xlu0 %1821
        %1823 = vrot.lane.b32.xlu0 %v1758, 32
        %v1824 = vpop.permute.xlu0 %1823
        %1825 = vrot.lane.b32.xlu0 %v1757, 32
        %v1826 = vpop.permute.xlu0 %1825
        %1827 = vrot.lane.b32.xlu0 %v1756, 32
        %v1828 = vpop.permute.xlu0 %1827
        %1829 = vrot.lane.b32.xlu0 %v1755, 32
        %v1830 = vpop.permute.xlu0 %1829
        %1831 = vrot.lane.b32.xlu0 %v1754, 32
        %v1832 = vpop.permute.xlu0 %1831
        %1833 = vrot.lane.b32.xlu0 %v1753, 32
        %v1834 = vpop.permute.xlu0 %1833
        %1835 = vrot.lane.b32.xlu0 %v1752, 32
        %v1836 = vpop.permute.xlu0 %1835
        %1837 = vrot.lane.b32.xlu0 %v1751, 32
        %v1838 = vpop.permute.xlu0 %1837
        %1839 = vrot.lane.b32.xlu0 %v1750, 32
        %v1840 = vpop.permute.xlu0 %1839
        %1841 = vrot.lane.b32.xlu0 %v1749, 32
        %v1842 = vpop.permute.xlu0 %1841
        %1843 = vrot.lane.b32.xlu0 %v1772, 32
        %v1844 = vpop.permute.xlu0 %1843
        %vm1869 = vcmask 294144
        %1870 = vst.msk [vmem:[#allocation3] sm:$0xff] %vm1869, %v1798
        %1871 = vst.msk [vmem:[#allocation3 + $0x8] sm:$0xff] %vm1869, %v1800
        %1872 = vst.msk [vmem:[#allocation3 + $0x10] sm:$0xff] %vm1869, %v1802
        %1873 = vst.msk [vmem:[#allocation3 + $0x18] sm:$0xff] %vm1869, %v1804
        %1874 = vst.msk [vmem:[#allocation3 + $0x20] sm:$0xff] %vm1869, %v1806
        %1875 = vst.msk [vmem:[#allocation3 + $0x28] sm:$0xff] %vm1869, %v1808
        %1876 = vst.msk [vmem:[#allocation3 + $0x30] sm:$0xff] %vm1869, %v1810
        %1877 = vst.msk [vmem:[#allocation3 + $0x38] sm:$0xff] %vm1869, %v1812
        %1878 = vst.msk [vmem:[#allocation3 + $0x40] sm:$0xff] %vm1869, %v1814
        %1879 = vst.msk [vmem:[#allocation3 + $0x48] sm:$0xff] %vm1869, %v1816
        %1880 = vst.msk [vmem:[#allocation3 + $0x50] sm:$0xff] %vm1869, %v1818
        %1881 = vst.msk [vmem:[#allocation3 + $0x58] sm:$0xff] %vm1869, %v1820
        %1882 = vst.msk [vmem:[#allocation3 + $0x60] sm:$0xff] %vm1869, %v1822
        %1883 = vst.msk [vmem:[#allocation3 + $0x68] sm:$0xff] %vm1869, %v1824
        %1884 = vst.msk [vmem:[#allocation3 + $0x70] sm:$0xff] %vm1869, %v1826
        %1885 = vst.msk [vmem:[#allocation3 + $0x78] sm:$0xff] %vm1869, %v1828
        %1886 = vst.msk [vmem:[#allocation3 + $0x80] sm:$0xff] %vm1869, %v1830
        %1887 = vst.msk [vmem:[#allocation3 + $0x88] sm:$0xff] %vm1869, %v1832
        %1888 = vst.msk [vmem:[#allocation3 + $0x90] sm:$0xff] %vm1869, %v1834
        %1889 = vst.msk [vmem:[#allocation3 + $0x98] sm:$0xff] %vm1869, %v1836
        %1890 = vst.msk [vmem:[#allocation3 + $0xa0] sm:$0xff] %vm1869, %v1838
        %1891 = vst.msk [vmem:[#allocation3 + $0xa8] sm:$0xff] %vm1869, %v1840
        %1892 = vst.msk [vmem:[#allocation3 + $0xb0] sm:$0xff] %vm1869, %v1842
        %1893 = vst.msk [vmem:[#allocation3 + $0xb8] sm:$0xff] %vm1869, %v1844
        %v1894 = vld [vmem:[#allocation3] sm:$0xff]
        %v1895 = vld [vmem:[#allocation3 + $0x8] sm:$0xff]
        %v1896 = vld [vmem:[#allocation3 + $0x10] sm:$0xff]
        %v1897 = vld [vmem:[#allocation3 + $0x18] sm:$0xff]
        %v1898 = vld [vmem:[#allocation3 + $0x20] sm:$0xff]
        %v1899 = vld [vmem:[#allocation3 + $0x28] sm:$0xff]
        %v1900 = vld [vmem:[#allocation3 + $0x30] sm:$0xff]
        %v1901 = vld [vmem:[#allocation3 + $0x38] sm:$0xff]
        %v1902 = vld [vmem:[#allocation3 + $0x40] sm:$0xff]
        %v1903 = vld [vmem:[#allocation3 + $0x48] sm:$0xff]
        %v1904 = vld [vmem:[#allocation3 + $0x50] sm:$0xff]
        %v1905 = vld [vmem:[#allocation3 + $0x58] sm:$0xff]
        %v1906 = vld [vmem:[#allocation3 + $0x60] sm:$0xff]
        %v1907 = vld [vmem:[#allocation3 + $0x68] sm:$0xff]
        %v1908 = vld [vmem:[#allocation3 + $0x70] sm:$0xff]
        %v1909 = vld [vmem:[#allocation3 + $0x78] sm:$0xff]
        %v1910 = vld [vmem:[#allocation3 + $0x80] sm:$0xff]
        %v1911 = vld [vmem:[#allocation3 + $0x88] sm:$0xff]
        %v1912 = vld [vmem:[#allocation3 + $0x90] sm:$0xff]
        %v1913 = vld [vmem:[#allocation3 + $0x98] sm:$0xff]
        %v1914 = vld [vmem:[#allocation3 + $0xa0] sm:$0xff]
        %v1915 = vld [vmem:[#allocation3 + $0xa8] sm:$0xff]
        %v1916 = vld [vmem:[#allocation3 + $0xb0] sm:$0xff]
        %v1917 = vld [vmem:[#allocation3 + $0xb8] sm:$0xff]
        %v1918 = vld [vmem:[%s3] sm:$0xff]
        %v1919 = vld [vmem:[%s3 + $0x8] sm:$0xff]
        %v1920 = vld [vmem:[%s3 + $0x10] sm:$0xff]
        %v1921 = vld [vmem:[%s3 + $0x18] sm:$0xff]
        %v1922 = vld [vmem:[%s3 + $0x20] sm:$0xf]
        %vm1923 = vcmask 293888
        %v1925 = vsel %vm1923, %v1894, 0
        %v1928 = vsel %vm1923, %v1895, 0
        %v1931 = vsel %vm1923, %v1896, 0
        %v1934 = vsel %vm1923, %v1897, 0
        %v1937 = vsel %vm1923, %v1898, 0
        %v1940 = vsel %vm1923, %v1899, 0
        %v1943 = vsel %vm1923, %v1900, 0
        %v1946 = vsel %vm1923, %v1901, 0
        %v1949 = vsel %vm1923, %v1902, 0
        %v1952 = vsel %vm1923, %v1903, 0
        %v1955 = vsel %vm1923, %v1904, 0
        %v1958 = vsel %vm1923, %v1905, 0
        %v1961 = vsel %vm1923, %v1906, 0
        %v1964 = vsel %vm1923, %v1907, 0
        %v1967 = vsel %vm1923, %v1908, 0
        %v1970 = vsel %vm1923, %v1909, 0
        %v1973 = vsel %vm1923, %v1910, 0
        %v1976 = vsel %vm1923, %v1911, 0
        %v1979 = vsel %vm1923, %v1912, 0
        %v1982 = vsel %vm1923, %v1913, 0
        %v1985 = vsel %vm1923, %v1914, 0
        %v1988 = vsel %vm1923, %v1915, 0
        %v1991 = vsel %vm1923, %v1916, 0
        %v1994 = vsel %vm1923, %v1917, 0
        %vm1996 = vcmask 1043456
        %v1998 = vsel %vm1996, %v1922, 0
        %2000 = vmatpush.msra.mxu0 0.0
        %2001 = vmatpush.msra.mxu0 0.0
        %2002 = vmatpush.msra.mxu0 0.0
        %2003 = vmatpush.msra.mxu0 0.0
        %2004 = vmatpush.msra.mxu0 0.0
        %2005 = vmatpush.msra.mxu0 0.0
        %2006 = vmatpush.msra.mxu0 0.0
        %2007 = vmatpush.msra.mxu0 0.0
        %2008 = vmatpush.msra.mxu0 0.0
        %2009 = vmatpush.msra.mxu0 0.0
        %2010 = vmatpush.msra.mxu0 0.0
        %2011 = vmatpush.msra.mxu0 %v1998
        %2012 = vmatpush.msra.mxu0 %v1921
        %2013 = vmatpush.msra.mxu0 %v1920
        %2014 = vmatpush.msra.mxu0 %v1919
        %2015 = vmatpush.msra.mxu0 %v1918
        %2016 = vmatmul.f32.gmra.mxu0 %v1925
        %v2017 = vpop.f32.mrf.mxu0
        %v2018 = vadd.f32 0.0, %v2017
        %2019 = vmatmul.f32.gmra.mxu0 %v1928
        %v2020 = vpop.f32.mrf.mxu0
        %v2021 = vadd.f32 0.0, %v2020
        %2022 = vmatmul.f32.gmra.mxu0 %v1931
        %v2023 = vpop.f32.mrf.mxu0
        %v2024 = vadd.f32 0.0, %v2023
        %2025 = vmatmul.f32.gmra.mxu0 %v1934
        %v2026 = vpop.f32.mrf.mxu0
        %v2027 = vadd.f32 0.0, %v2026
        %2028 = vmatmul.f32.gmra.mxu0 %v1937
        %v2029 = vpop.f32.mrf.mxu0
        %v2030 = vadd.f32 0.0, %v2029
        %2031 = vmatmul.f32.gmra.mxu0 %v1940
        %v2032 = vpop.f32.mrf.mxu0
        %v2033 = vadd.f32 0.0, %v2032
        %2034 = vmatmul.f32.gmra.mxu0 %v1943
        %v2035 = vpop.f32.mrf.mxu0
        %v2036 = vadd.f32 0.0, %v2035
        %2037 = vmatmul.f32.gmra.mxu0 %v1946
        %v2038 = vpop.f32.mrf.mxu0
        %v2039 = vadd.f32 0.0, %v2038
        %2040 = vmatmul.f32.gmra.mxu0 %v1949
        %v2041 = vpop.f32.mrf.mxu0
        %v2042 = vadd.f32 0.0, %v2041
        %2043 = vmatmul.f32.gmra.mxu0 %v1952
        %v2044 = vpop.f32.mrf.mxu0
        %v2045 = vadd.f32 0.0, %v2044
        %2046 = vmatmul.f32.gmra.mxu0 %v1955
        %v2047 = vpop.f32.mrf.mxu0
        %v2048 = vadd.f32 0.0, %v2047
        %2049 = vmatmul.f32.gmra.mxu0 %v1958
        %v2050 = vpop.f32.mrf.mxu0
        %v2051 = vadd.f32 0.0, %v2050
        %2052 = vmatmul.f32.gmra.mxu0 %v1961
        %v2053 = vpop.f32.mrf.mxu0
        %v2054 = vadd.f32 0.0, %v2053
        %2055 = vmatmul.f32.gmra.mxu0 %v1964
        %v2056 = vpop.f32.mrf.mxu0
        %v2057 = vadd.f32 0.0, %v2056
        %2058 = vmatmul.f32.gmra.mxu0 %v1967
        %v2059 = vpop.f32.mrf.mxu0
        %v2060 = vadd.f32 0.0, %v2059
        %2061 = vmatmul.f32.gmra.mxu0 %v1970
        %v2062 = vpop.f32.mrf.mxu0
        %v2063 = vadd.f32 0.0, %v2062
        %2064 = vmatmul.f32.gmra.mxu0 %v1973
        %v2065 = vpop.f32.mrf.mxu0
        %v2066 = vadd.f32 0.0, %v2065
        %2067 = vmatmul.f32.gmra.mxu0 %v1976
        %v2068 = vpop.f32.mrf.mxu0
        %v2069 = vadd.f32 0.0, %v2068
        %2070 = vmatmul.f32.gmra.mxu0 %v1979
        %v2071 = vpop.f32.mrf.mxu0
        %v2072 = vadd.f32 0.0, %v2071
        %2073 = vmatmul.f32.gmra.mxu0 %v1982
        %v2074 = vpop.f32.mrf.mxu0
        %v2075 = vadd.f32 0.0, %v2074
        %2076 = vmatmul.f32.gmra.mxu0 %v1985
        %v2077 = vpop.f32.mrf.mxu0
        %v2078 = vadd.f32 0.0, %v2077
        %2079 = vmatmul.f32.gmra.mxu0 %v1988
        %v2080 = vpop.f32.mrf.mxu0
        %v2081 = vadd.f32 0.0, %v2080
        %2082 = vmatmul.f32.gmra.mxu0 %v1991
        %v2083 = vpop.f32.mrf.mxu0
        %v2084 = vadd.f32 0.0, %v2083
        %2085 = vmatmul.f32.gmra.mxu0 %v1994
        %v2086 = vpop.f32.mrf.mxu0
        %v2087 = vadd.f32 0.0, %v2086
        %2088 = vdwg.mxu0
        %vm2089 = vcmask 64512
        %2090 = vst.msk [vmem:[%s437] sm:$0xff] %vm2089, %v2018
        %2091 = vst.msk [vmem:[%s437 + $0x8] sm:$0xff] %vm2089, %v2021
        %2092 = vst.msk [vmem:[%s437 + $0x10] sm:$0xff] %vm2089, %v2024
        %2093 = vst.msk [vmem:[%s437 + $0x18] sm:$0xff] %vm2089, %v2027
        %2094 = vst.msk [vmem:[%s437 + $0x20] sm:$0xff] %vm2089, %v2030
        %2095 = vst.msk [vmem:[%s437 + $0x28] sm:$0xff] %vm2089, %v2033
        %2096 = vst.msk [vmem:[%s437 + $0x30] sm:$0xff] %vm2089, %v2036
        %2097 = vst.msk [vmem:[%s437 + $0x38] sm:$0xff] %vm2089, %v2039
        %2098 = vst.msk [vmem:[%s437 + $0x40] sm:$0xff] %vm2089, %v2042
        %2099 = vst.msk [vmem:[%s437 + $0x48] sm:$0xff] %vm2089, %v2045
        %2100 = vst.msk [vmem:[%s437 + $0x50] sm:$0xff] %vm2089, %v2048
        %2101 = vst.msk [vmem:[%s437 + $0x58] sm:$0xff] %vm2089, %v2051
        %2102 = vst.msk [vmem:[%s437 + $0x60] sm:$0xff] %vm2089, %v2054
        %2103 = vst.msk [vmem:[%s437 + $0x68] sm:$0xff] %vm2089, %v2057
        %2104 = vst.msk [vmem:[%s437 + $0x70] sm:$0xff] %vm2089, %v2060
        %2105 = vst.msk [vmem:[%s437 + $0x78] sm:$0xff] %vm2089, %v2063
        %2106 = vst.msk [vmem:[%s437 + $0x80] sm:$0xff] %vm2089, %v2066
        %2107 = vst.msk [vmem:[%s437 + $0x88] sm:$0xff] %vm2089, %v2069
        %2108 = vst.msk [vmem:[%s437 + $0x90] sm:$0xff] %vm2089, %v2072
        %2109 = vst.msk [vmem:[%s437 + $0x98] sm:$0xff] %vm2089, %v2075
        %2110 = vst.msk [vmem:[%s437 + $0xa0] sm:$0xff] %vm2089, %v2078
        %2111 = vst.msk [vmem:[%s437 + $0xa8] sm:$0xff] %vm2089, %v2081
        %2112 = vst.msk [vmem:[%s437 + $0xb0] sm:$0xff] %vm2089, %v2084
        %2113 = vst.msk [vmem:[%s437 + $0xb8] sm:$0xff] %vm2089, %v2087
        %v2114 = vsel %vm449, 1, 0
        %v2115 = vsel %vm450, 1, 0
        %v2116 = vsel %vm451, 1, 0
        %vm2117 = vcmp.eq.s32.totalorder %v2114, 1
        %vm2118 = vcmp.eq.s32.totalorder %v2115, 1
        %vm2119 = vcmp.eq.s32.totalorder %v2116, 1
        %v2120 = vsel %vm2117, %v2018, 0.0
        %v2121 = vsel %vm2118, %v2021, 0.0
        %v2122 = vsel %vm2119, %v2024, 0.0
        %v2123 = vsel %vm2117, %v2027, 0.0
        %v2124 = vsel %vm2118, %v2030, 0.0
        %v2125 = vsel %vm2119, %v2033, 0.0
        %v2126 = vsel %vm2117, %v2036, 0.0
        %v2127 = vsel %vm2118, %v2039, 0.0
        %v2128 = vsel %vm2119, %v2042, 0.0
        %v2129 = vsel %vm2117, %v2045, 0.0
        %v2130 = vsel %vm2118, %v2048, 0.0
        %v2131 = vsel %vm2119, %v2051, 0.0
        %v2132 = vsel %vm2117, %v2054, 0.0
        %v2133 = vsel %vm2118, %v2057, 0.0
        %v2134 = vsel %vm2119, %v2060, 0.0
        %v2135 = vsel %vm2117, %v2063, 0.0
        %v2136 = vsel %vm2118, %v2066, 0.0
        %v2137 = vsel %vm2119, %v2069, 0.0
        %v2138 = vsel %vm2117, %v2072, 0.0
        %v2139 = vsel %vm2118, %v2075, 0.0
        %v2140 = vsel %vm2119, %v2078, 0.0
        %v2141 = vsel %vm2117, %v2081, 0.0
        %v2142 = vsel %vm2118, %v2084, 0.0
        %v2143 = vsel %vm2119, %v2087, 0.0
        %v2144 = vsel %vm2089, %v2120, 0.0
        %v2145 = vsel %vm2089, %v2121, 0.0
        %v2146 = vadd.f32 %v2144, %v2145
        %v2147 = vsel %vm2089, %v2122, 0.0
        %v2148 = vadd.f32 %v2146, %v2147
        %v2149 = vsel %vm2089, %v2123, 0.0
        %v2150 = vadd.f32 %v2148, %v2149
        %v2151 = vsel %vm2089, %v2124, 0.0
        %v2152 = vadd.f32 %v2150, %v2151
        %v2153 = vsel %vm2089, %v2125, 0.0
        %v2154 = vadd.f32 %v2152, %v2153
        %v2155 = vsel %vm2089, %v2126, 0.0
        %v2156 = vadd.f32 %v2154, %v2155
        %v2157 = vsel %vm2089, %v2127, 0.0
        %v2158 = vadd.f32 %v2156, %v2157
        %v2159 = vsel %vm2089, %v2128, 0.0
        %v2160 = vadd.f32 %v2158, %v2159
        %v2161 = vsel %vm2089, %v2129, 0.0
        %v2162 = vadd.f32 %v2160, %v2161
        %v2163 = vsel %vm2089, %v2130, 0.0
        %v2164 = vadd.f32 %v2162, %v2163
        %v2165 = vsel %vm2089, %v2131, 0.0
        %v2166 = vadd.f32 %v2164, %v2165
        %v2167 = vsel %vm2089, %v2132, 0.0
        %v2168 = vadd.f32 %v2166, %v2167
        %v2169 = vsel %vm2089, %v2133, 0.0
        %v2170 = vadd.f32 %v2168, %v2169
        %v2171 = vsel %vm2089, %v2134, 0.0
        %v2172 = vadd.f32 %v2170, %v2171
        %v2173 = vsel %vm2089, %v2135, 0.0
        %v2174 = vadd.f32 %v2172, %v2173
        %v2175 = vsel %vm2089, %v2136, 0.0
        %v2176 = vadd.f32 %v2174, %v2175
        %v2177 = vsel %vm2089, %v2137, 0.0
        %v2178 = vadd.f32 %v2176, %v2177
        %v2179 = vsel %vm2089, %v2138, 0.0
        %v2180 = vadd.f32 %v2178, %v2179
        %v2181 = vsel %vm2089, %v2139, 0.0
        %v2182 = vadd.f32 %v2180, %v2181
        %v2183 = vsel %vm2089, %v2140, 0.0
        %v2184 = vadd.f32 %v2182, %v2183
        %v2185 = vsel %vm2089, %v2141, 0.0
        %v2186 = vadd.f32 %v2184, %v2185
        %v2187 = vsel %vm2089, %v2142, 0.0
        %v2188 = vadd.f32 %v2186, %v2187
        %v2189 = vsel %vm2089, %v2143, 0.0
        %v2190 = vadd.f32 %v2188, %v2189
        %v2191 = vrot.slane %v2190, 4
        %v2192 = vadd.f32 %v2190, %v2191
        %v2193 = vrot.slane %v2192, 2
        %v2194 = vadd.f32 %v2192, %v2193
        %v2195 = vrot.slane %v2194, 1
        %v2196 = vadd.f32 %v2194, %v2195
        %vm2197 = vcmask 57344
        %2198 = vst.msk [vmem:[%s376] sm:$0x1] %vm2197, %v2196
        %v2199 = vmul.f32 %v2120, %v2120
        %v2200 = vmul.f32 %v2121, %v2121
        %v2201 = vmul.f32 %v2122, %v2122
        %v2202 = vmul.f32 %v2123, %v2123
        %v2203 = vmul.f32 %v2124, %v2124
        %v2204 = vmul.f32 %v2125, %v2125
        %v2205 = vmul.f32 %v2126, %v2126
        %v2206 = vmul.f32 %v2127, %v2127
        %v2207 = vmul.f32 %v2128, %v2128
        %v2208 = vmul.f32 %v2129, %v2129
        %v2209 = vmul.f32 %v2130, %v2130
        %v2210 = vmul.f32 %v2131, %v2131
        %v2211 = vmul.f32 %v2132, %v2132
        %v2212 = vmul.f32 %v2133, %v2133
        %v2213 = vmul.f32 %v2134, %v2134
        %v2214 = vmul.f32 %v2135, %v2135
        %v2215 = vmul.f32 %v2136, %v2136
        %v2216 = vmul.f32 %v2137, %v2137
        %v2217 = vmul.f32 %v2138, %v2138
        %v2218 = vmul.f32 %v2139, %v2139
        %v2219 = vmul.f32 %v2140, %v2140
        %v2220 = vmul.f32 %v2141, %v2141
        %v2221 = vmul.f32 %v2142, %v2142
        %v2222 = vmul.f32 %v2143, %v2143
        %v2223 = vsel %vm2089, %v2199, 0.0
        %v2224 = vsel %vm2089, %v2200, 0.0
        %v2225 = vadd.f32 %v2223, %v2224
        %v2226 = vsel %vm2089, %v2201, 0.0
        %v2227 = vadd.f32 %v2225, %v2226
        %v2228 = vsel %vm2089, %v2202, 0.0
        %v2229 = vadd.f32 %v2227, %v2228
        %v2230 = vsel %vm2089, %v2203, 0.0
        %v2231 = vadd.f32 %v2229, %v2230
        %v2232 = vsel %vm2089, %v2204, 0.0
        %v2233 = vadd.f32 %v2231, %v2232
        %v2234 = vsel %vm2089, %v2205, 0.0
        %v2235 = vadd.f32 %v2233, %v2234
        %v2236 = vsel %vm2089, %v2206, 0.0
        %v2237 = vadd.f32 %v2235, %v2236
        %v2238 = vsel %vm2089, %v2207, 0.0
        %v2239 = vadd.f32 %v2237, %v2238
        %v2240 = vsel %vm2089, %v2208, 0.0
        %v2241 = vadd.f32 %v2239, %v2240
        %v2242 = vsel %vm2089, %v2209, 0.0
        %v2243 = vadd.f32 %v2241, %v2242
        %v2244 = vsel %vm2089, %v2210, 0.0
        %v2245 = vadd.f32 %v2243, %v2244
        %v2246 = vsel %vm2089, %v2211, 0.0
        %v2247 = vadd.f32 %v2245, %v2246
        %v2248 = vsel %vm2089, %v2212, 0.0
        %v2249 = vadd.f32 %v2247, %v2248
        %v2250 = vsel %vm2089, %v2213, 0.0
        %v2251 = vadd.f32 %v2249, %v2250
        %v2252 = vsel %vm2089, %v2214, 0.0
        %v2253 = vadd.f32 %v2251, %v2252
        %v2254 = vsel %vm2089, %v2215, 0.0
        %v2255 = vadd.f32 %v2253, %v2254
        %v2256 = vsel %vm2089, %v2216, 0.0
        %v2257 = vadd.f32 %v2255, %v2256
        %v2258 = vsel %vm2089, %v2217, 0.0
        %v2259 = vadd.f32 %v2257, %v2258
        %v2260 = vsel %vm2089, %v2218, 0.0
        %v2261 = vadd.f32 %v2259, %v2260
        %v2262 = vsel %vm2089, %v2219, 0.0
        %v2263 = vadd.f32 %v2261, %v2262
        %v2264 = vsel %vm2089, %v2220, 0.0
        %v2265 = vadd.f32 %v2263, %v2264
        %v2266 = vsel %vm2089, %v2221, 0.0
        %v2267 = vadd.f32 %v2265, %v2266
        %v2268 = vsel %vm2089, %v2222, 0.0
        %v2269 = vadd.f32 %v2267, %v2268
        %v2270 = vrot.slane %v2269, 4
        %v2271 = vadd.f32 %v2269, %v2270
        %v2272 = vrot.slane %v2271, 2
        %v2273 = vadd.f32 %v2271, %v2272
        %v2274 = vrot.slane %v2273, 1
        %v2275 = vadd.f32 %v2273, %v2274
        %2276 = vst.msk [vmem:[%s382] sm:$0x1] %vm2197, %v2275
        %s2277 = smul.u32 8, %s29
        %p2278 = scmp.lt.s32.totalorder %s28, 1
        %s2279 = scalar_select %p2278, %s28, 1
        %p2280 = scmp.lt.s32.totalorder %s2277, 15
        %s2281 = scalar_select %p2280, %s2277, 15
        %s2282 = smul.addr %s2281, 3
        %s2283 = smul.addr %s2279, 48
        %s2284 = sadd.s32 %s2282, %s2283
        %s2285 = smul.addr %s2284, 8
        %s2286 = scalar_lea.vmem %s4, %s2285
        %s2287 = sand.u32 %s191, 1
        %s2288 = scalar_lea.sflag [#allocation5], %s2287
        %s2289 = sand.u32 %s191, 1
        %s2290 = scalar_lea.vmem [#allocation4], %s2289
        %s2291 = sand.u32 %s219, 1
        %s2292 = scalar_lea.sflag [#allocation7], %s2291
        %s2293 = sand.u32 %s219, 1
        %s2294 = scalar_lea.vmem [#allocation6], %s2293
        // Predicated region
        $region53: #{tpu_custom_call.1} parent=35 // pred_check
          %p2295 = pneg %p173
        $region54: #{tpu_custom_call.1} parent=35 // pred_check_branch
          %2297 = sbr.rel (%p2295) target = $region56
        $region55: #{tpu_custom_call.1} parent=35 // pred_region
          %s2298 = smul.u32 8, %s29
        $region56: #{tpu_custom_call.1} parent=35 // pred_fallthru
          _
        // Predicated region
        $region57: #{tpu_custom_call.1} parent=35 // pred_check
          %p2299 = pneg %p201
        $region58: #{tpu_custom_call.1} parent=35 // pred_check_branch
          %2301 = sbr.rel (%p2299) target = $region60
        $region59: #{tpu_custom_call.1} parent=35 // pred_region
          %2303 = vsyncadd %s2288, 0
          %s2304 = smul.addr %s28, 2
          %s2305 = sadd.s32 %s29, %s2304
          %s2306 = scalar_lea.hbm %s5, %s2305
          %s2308 = sshll.u32 %s2290, 4
          %s2309 = int_to_ptr.vmem [resolvable:$true] %s2308
          %s2310 = sshll.u32 %s2306, 4
          %s2311 = int_to_ptr.hbm [resolvable:$true] %s2310
          %2313 = dma.vmem_to_hbm [thread:$0]  %s2309, 16, %s2311, %s2288
        $region60: #{tpu_custom_call.1} parent=35 // pred_fallthru
          _
        // Predicated region
        $region61: #{tpu_custom_call.1} parent=35 // pred_check
          %p2314 = pneg %p229
        $region62: #{tpu_custom_call.1} parent=35 // pred_check_branch
          %2316 = sbr.rel (%p2314) target = $region64
        $region63: #{tpu_custom_call.1} parent=35 // pred_region
          %2318 = vsyncadd %s2292, 0
          %s2319 = smul.addr %s28, 2
          %s2320 = sadd.s32 %s29, %s2319
          %s2321 = scalar_lea.hbm %s6, %s2320
          %s2323 = sshll.u32 %s2294, 4
          %s2324 = int_to_ptr.vmem [resolvable:$true] %s2323
          %s2325 = sshll.u32 %s2321, 4
          %s2326 = int_to_ptr.hbm [resolvable:$true] %s2325
          %2328 = dma.vmem_to_hbm [thread:$0]  %s2324, 16, %s2326, %s2292
        $region64: #{tpu_custom_call.1} parent=35 // pred_fallthru
          _
      $region36: #{tpu_custom_call.1} parent=5 // pred_fallthru
        _
      %p2329 = scmp.le.s32.totalorder 2, %s19
      // Predicated region
      $region65: #{tpu_custom_call.1} parent=5 // pred_check
        %p2330 = pneg %p2329
      $region66: #{tpu_custom_call.1} parent=5 // pred_check_branch
        %2332 = sbr.rel (%p2330) target = $region68
      $region67: #{tpu_custom_call.1} parent=5 // pred_region
        %s2333 = ssub.s32 %s19, 2
        // Predicated region
        $region69: #{tpu_custom_call.1} parent=67 // pred_check
          %p2334 = pneg %p179
        $region70: #{tpu_custom_call.1} parent=67 // pred_check_branch
          %2336 = sbr.rel (%p2334) target = $region72
        $region71: #{tpu_custom_call.1} parent=67 // pred_region
          %s2337 = smul.u32 8, %s31
          %p2338 = scmp.lt.s32.totalorder %s30, 1
          %s2339 = scalar_select %p2338, %s30, 1
          %p2340 = scmp.lt.s32.totalorder %s2337, 15
          %s2341 = scalar_select %p2340, %s2337, 15
          %s2342 = smul.addr %s2341, 3
          %s2343 = smul.addr %s2339, 48
          %s2344 = sadd.s32 %s2342, %s2343
          %s2345 = smul.addr %s2344, 8
          %s2346 = scalar_lea.vmem %s4, %s2345
        $region72: #{tpu_custom_call.1} parent=67 // pred_fallthru
          _
        // Predicated region
        $region73: #{tpu_custom_call.1} parent=67 // pred_check
          %p2347 = pneg %p207
        $region74: #{tpu_custom_call.1} parent=67 // pred_check_branch
          %2349 = sbr.rel (%p2347) target = $region76
        $region75: #{tpu_custom_call.1} parent=67 // pred_region
          %s2350 = sand.u32 %s192, 1
          %s2351 = scalar_lea.sflag [#allocation5], %s2350
          %s2352 = sand.u32 %s192, 1
          %s2353 = scalar_lea.vmem [#allocation4], %s2352
          %2355 = dma.done %s2351, 16
        $region76: #{tpu_custom_call.1} parent=67 // pred_fallthru
          _
        // Predicated region
        $region77: #{tpu_custom_call.1} parent=67 // pred_check
          %p2356 = pneg %p235
        $region78: #{tpu_custom_call.1} parent=67 // pred_check_branch
          %2358 = sbr.rel (%p2356) target = $region80
        $region79: #{tpu_custom_call.1} parent=67 // pred_region
          %s2359 = sand.u32 %s220, 1
          %s2360 = scalar_lea.sflag [#allocation7], %s2359
          %s2361 = sand.u32 %s220, 1
          %s2362 = scalar_lea.vmem [#allocation6], %s2361
          %2364 = dma.done %s2360, 16
        $region80: #{tpu_custom_call.1} parent=67 // pred_fallthru
          _
      $region68: #{tpu_custom_call.1} parent=5 // pred_fallthru
        _
    $region6: #{tpu_custom_call.1} parent=1 // loop_footer
      %s23 = sadd.s32 1, %s19
    $region7: #{tpu_custom_call.1} parent=1 // loop_footer_branch
      %18 = sbr.rel target = $region3
    $region8: #{tpu_custom_call.1} parent=1 // loop_exit
      _
    %2365 = vsyncpa [#allocation5], 1
    %s2366 = scalar_lea.sflag [#allocation5], 1
    %2367 = vsyncpa %s2366, 1
    %2368 = vsyncpa [#allocation7], 1
    %s2369 = scalar_lea.sflag [#allocation7], 1
    %2370 = vsyncpa %s2369, 1

</llo_original>
